<compile_context>
chip_gen: v5e
topology: v5e:2x2
jax: 0.10.0
libtpu: 0.0.40
codegen_flags: <defaults>
</compile_context>

<pallas_src>
import numpy as np
import jax
import jax.numpy as jnp
from jax.experimental import pallas as pl
from jax.experimental.pallas import tpu as pltpu

# ---- model hyper-parameters (chebnet defaults) -------------------------------
C = 64            # channel_num (electrodes)
F = 128           # num_features (lane-padded working width)
K = 7             # graph_convolution_kernel taps
F2 = F - 3        # valid features after Conv2d(1, 1, (1, 4)) -> 125
B = 2             # batch size
BC = B * C        # stacked (batch, electrode) rows = 128
ALPHA = 0.2       # LeakyReLU slope
BN_EPS = 1e-5
BN_SCALE = float(1.0 / np.sqrt(1.0 + BN_EPS))   # eval-mode BN with default stats
NEG_BIG = -1e30   # additive block mask value for the batched softmax


# ---- kernel 1: BN0 + 1x4 conv + self-graph attention -> packed feats, adj|lap ---
def _preproc_attn_kernel(x_ref, wband_ref, bias_ref, wkq_ref, maskadd_ref,
                         fold_ref, foldt_ref, xc_ref, adjlap_ref):
    x = x_ref[...]                                            # (BC, F)

    # BN0 (eval) + Conv2d(1,1,(1,4)) as one banded MXU matmul; wband columns
    # >= F2 are zero so the conv features come out lane-padded with exact zeros.
    y = jnp.dot(x, wband_ref[...], preferred_element_type=jnp.float32) + bias_ref[...]

    # Emit conv features already packed (C, B*F): both batch items side by side
    # along lanes; both stores are 128-lane aligned (unmasked).
    xc_ref[:, 0:F] = y[0:C, :]
    xc_ref[:, F:2 * F] = y[C:BC, :]

    # self_graph_attention: key/query projections on the MXU (lane 0 = w_key,
    # lane 1 = w_query), then a rank-1 outer product.  d_k = 1 -> no scaling.
    kq = jnp.dot(y, wkq_ref[...], preferred_element_type=jnp.float32)   # (BC, 128)
    qry_col = kq[:, 1:2]                                      # (BC, 1)
    key_row = kq[:, 0][None, :]                               # (1, BC)
    s = qry_col * key_row                                     # (BC, BC) outer product
    s = jnp.where(s > 0, s, ALPHA * s)                        # LeakyReLU(0.2)
    s = s + maskadd_ref[...]                                  # keep per-batch diag blocks
    s = s - jnp.max(s, axis=-1, keepdims=True)                # softmax over dim=2
    e = jnp.exp(s)
    p = e * pl.reciprocal(jnp.sum(e, axis=-1, keepdims=True), approx=True)
    # Dropout(0.4) after softmax is identity in eval mode.

    # Mean over the batch: off-diagonal blocks of p are exactly zero, so one MXU
    # sandwich with the constant fold selectors sums both diagonal blocks.
    tmp = jnp.dot(p, foldt_ref[...], preferred_element_type=jnp.float32)      # (BC, C)
    att = (1.0 / B) * jnp.dot(fold_ref[...], tmp,
                              preferred_element_type=jnp.float32)             # (C, C)
    adj = 0.5 * (att + att.T)                                 # symmetrize

    # Pack adjacency and Laplacian (D - A, PyTorch dim=0 broadcast) into one
    # lane-dense (C, 2C) slab -> single unmasked writeback DMA.
    deg = jnp.sum(adj, axis=0, keepdims=True)                 # (1, C)
    adjlap_ref[...] = jnp.concatenate([adj, deg - adj], axis=1)


preproc_attn = pl.pallas_call(
    _preproc_attn_kernel,
    out_shape=(jax.ShapeDtypeStruct((C, B * F), jnp.float32),   # packed conv features
               jax.ShapeDtypeStruct((C, 2 * C), jnp.float32)),  # adjacency | Laplacian
    grid=(1,),
    in_specs=[
        pl.BlockSpec((BC, F), lambda i: (0, 0)),      # x (B*C, F)
        pl.BlockSpec((F, F), lambda i: (0, 0)),       # banded conv matrix (BN0 folded)
        pl.BlockSpec((1, F), lambda i: (0, 0)),       # conv bias row (lane-masked)
        pl.BlockSpec((F, 128), lambda i: (0, 0)),     # key/query projection matrix
        pl.BlockSpec((BC, BC), lambda i: (0, 0)),     # additive softmax block mask
        pl.BlockSpec((C, BC), lambda i: (0, 0)),      # batch fold selector [I | I]
        pl.BlockSpec((BC, C), lambda i: (0, 0)),      # batch fold selector [I ; I]
    ],
    out_specs=(pl.BlockSpec((C, B * F), lambda i: (0, 0)),
               pl.BlockSpec((C, 2 * C), lambda i: (0, 0))),
)


# ---- kernel 2: all-K spectral graph conv fused with the FC head -----------------
def _gconv_head_kernel(vd_ref, vt_ref, xc_ref, msel_ref,
                       w1t_ref, b1t_ref, w2t_ref, b2t_ref, out_ref):
    # z = V^T X with both batch items packed along lanes (C, B*F).
    z = jnp.dot(vt_ref[...], xc_ref[...], preferred_element_type=jnp.float32)
    # All K taps x both batch items in a single MXU matmul, then ReLU.
    # vd (built on the host under the eig sync) holds rows V*diag(d_k) stacked.
    y = jnp.dot(vd_ref[...], z, preferred_element_type=jnp.float32)     # (K*C, B*F)
    y = jnp.maximum(y, 0.0)

    # Mean over the F2 valid features per batch item; BN1/BN2 eval scales are
    # folded into the constant selector (padded feature lanes are exactly zero).
    feat_t = jnp.dot(y, msel_ref[...], preferred_element_type=jnp.float32)   # (K*C, B)

    # FC head in transposed orientation (448-long axis on sublanes).
    # Dropout(0.1) layers are identity in eval mode.
    h_t = jnp.tanh(jnp.dot(w1t_ref[...], feat_t,
                           preferred_element_type=jnp.float32) + b1t_ref[...])  # (8, B)
    logits_t = jnp.dot(w2t_ref[...], h_t,
                       preferred_element_type=jnp.float32) + b2t_ref[...]       # (2, B)
    zt = logits_t - jnp.max(logits_t, axis=0, keepdims=True)   # nn.Softmax -> dim=1
    e = jnp.exp(zt)
    out_ref[...] = e / jnp.sum(e, axis=0, keepdims=True)       # exact divide for probs


gconv_head = pl.pallas_call(
    _gconv_head_kernel,
    out_shape=jax.ShapeDtypeStruct((2, B), jnp.float32),       # softmax probs, transposed
    grid=(1,),
    in_specs=[
        pl.BlockSpec((K * C, C), lambda i: (0, 0)),   # vd = tile(V) * repeat(d_k)
        pl.BlockSpec((C, C), lambda i: (0, 0)),       # V^T
        pl.BlockSpec((C, B * F), lambda i: (0, 0)),   # packed conv features
        pl.BlockSpec((B * F, B), lambda i: (0, 0)),   # feature-mean selector (BN folded)
        pl.BlockSpec((8, K * C), lambda i: (0, 0)),   # fc1 weight^T
        pl.BlockSpec((8, 1), lambda i: (0, 0)),       # fc1 bias^T
        pl.BlockSpec((2, 8), lambda i: (0, 0)),       # fc2 weight^T
        pl.BlockSpec((2, 1), lambda i: (0, 0)),       # fc2 bias^T
    ],
    out_specs=pl.BlockSpec((2, B), lambda i: (0, 0)),
)


# ---- parameter init (deterministic, synthetic) ---------------------------------
def init_params(seed=0):
    ks = jax.random.split(jax.random.PRNGKey(seed), 9)
    # graph_kernel (K, 1, C): xavier_normal (fan_in=C, fan_out=K*C)
    std = float(np.sqrt(2.0 / (C + K * C)))
    graph_kernel = std * jax.random.normal(ks[0], (K, 1, C), jnp.float32)
    # weight_key / weight_query (F2, 1): xavier_uniform, gain=1.414
    bound = float(1.414 * np.sqrt(6.0 / (F2 + 1)))
    w_key = jax.random.uniform(ks[1], (F2, 1), jnp.float32, -bound, bound)
    w_query = jax.random.uniform(ks[2], (F2, 1), jnp.float32, -bound, bound)
    # conv1: weight (1,1,1,4), bias (1,)
    cbound = float(1.0 / np.sqrt(4.0))
    conv_w = jax.random.uniform(ks[3], (4,), jnp.float32, -cbound, cbound)
    conv_b = jax.random.uniform(ks[4], (1,), jnp.float32, -cbound, cbound)
    # fc: Linear(K*C, 8), Linear(8, 2)
    l1 = float(1.0 / np.sqrt(K * C))
    fc1_w = jax.random.uniform(ks[5], (K * C, 8), jnp.float32, -l1, l1)
    fc1_b = jax.random.uniform(ks[6], (1, 8), jnp.float32, -l1, l1)
    l2 = float(1.0 / np.sqrt(8.0))
    fc2_w = jax.random.uniform(ks[7], (8, 2), jnp.float32, -l2, l2)
    fc2_b = jax.random.uniform(ks[8], (1, 2), jnp.float32, -l2, l2)
    return dict(graph_kernel=graph_kernel, w_key=w_key, w_query=w_query,
                conv_w=conv_w, conv_b=conv_b,
                fc1_w=fc1_w, fc1_b=fc1_b, fc2_w=fc2_w, fc2_b=fc2_b)


def pack_params(params):
    """One-time host-side layout plumbing: precompute every constant operand."""
    conv_w = np.asarray(params["conv_w"], np.float32)
    conv_b = np.asarray(params["conv_b"], np.float32)
    w_key = np.asarray(params["w_key"], np.float32)[:, 0]
    w_query = np.asarray(params["w_query"], np.float32)[:, 0]

    # Banded conv matrix with BN0 (eval) scale folded; columns >= F2 zeroed so the
    # conv output is born lane-padded with exact zeros.
    i_idx = np.arange(F)[:, None]
    j_idx = np.arange(F)[None, :]
    diff = i_idx - j_idx
    wband = np.zeros((F, F), np.float32)
    for t in range(4):
        wband = np.where(diff == t, conv_w[t], wband)
    wband = np.where(j_idx < F2, wband * BN_SCALE, 0.0).astype(np.float32)
    bias_row = np.where(np.arange(F)[None, :] < F2, conv_b[0], 0.0).astype(np.float32)

    # key/query projection matrix: one MXU matmul gives both projections.
    wkq = np.zeros((F, 128), np.float32)
    wkq[:F2, 0] = w_key
    wkq[:F2, 1] = w_query

    # Additive softmax block mask (keep per-batch diagonal CxC blocks only).
    r = np.arange(BC)[:, None]
    c = np.arange(BC)[None, :]
    maskadd = np.where((r < C) == (c < C), 0.0, NEG_BIG).astype(np.float32)

    # Batch-fold selectors for the attention mean over the batch.
    eye = np.eye(C, dtype=np.float32)
    fold = np.concatenate([eye] * B, axis=1).astype(np.float32)    # (C, BC)
    fold_t = np.concatenate([eye] * B, axis=0).astype(np.float32)  # (BC, C)

    # Feature-mean selector with BN1/BN2 (eval) scalar scales folded in.
    f_idx = np.arange(B * F)[:, None]
    b_idx = np.arange(B)[None, :]
    dfeat = f_idx - F * b_idx
    mean_sel = np.where((dfeat >= 0) & (dfeat < F),
                        BN_SCALE * BN_SCALE / float(F2), 0.0).astype(np.float32)

    gk = np.asarray(params["graph_kernel"], np.float32).reshape(K, C)
    fc1_w = np.asarray(params["fc1_w"], np.float32)
    fc1_b = np.asarray(params["fc1_b"], np.float32)
    fc2_w = np.asarray(params["fc2_w"], np.float32)
    fc2_b = np.asarray(params["fc2_b"], np.float32)

    return dict(
        wband=jnp.asarray(wband), bias_row=jnp.asarray(bias_row),
        wkq=jnp.asarray(wkq), maskadd=jnp.asarray(maskadd),
        fold=jnp.asarray(fold), fold_t=jnp.asarray(fold_t),
        mean_sel=jnp.asarray(mean_sel), gk=jnp.asarray(gk),
        w1t=jnp.asarray(fc1_w.T), b1t=jnp.asarray(fc1_b.T),
        w2t=jnp.asarray(fc2_w.T), b2t=jnp.asarray(fc2_b.T),
    )


# ---- host eigendecomposition (hidden under the mandatory sync) ------------------
def _host_eig_cheb(lap, gk):
    # TODO(synk): torch.linalg.eig (non-symmetric eig) has no Pallas/TPU
    # equivalent; the 64x64 eig runs on the host inside this pure_callback, and
    # the Chebyshev operand vd = tile(V) * repeat(d_k) is built here for free.
    lap = np.asarray(lap, dtype=np.float32)
    gk = np.asarray(gk, dtype=np.float32)                      # (K, C)
    _, evets = np.linalg.eig(lap)
    evets = np.real(evets).astype(np.float32)                  # (C, C)
    vd = (np.tile(evets, (K, 1)) * np.repeat(gk, C, axis=0)).astype(np.float32)
    vt = np.ascontiguousarray(evets.T).astype(np.float32)
    return vd, vt


# ---- full forward (single jit: 1 dispatch + 1 host callback) --------------------
@jax.jit
def chebnet_forward(x_flat, packed):
    # data.x: (batchsize*C, F); electrodes map to sublanes, features to lanes.
    xcpack, adjlap = preproc_attn(x_flat, packed["wband"], packed["bias_row"],
                                  packed["wkq"], packed["maskadd"],
                                  packed["fold"], packed["fold_t"])
    adj = adjlap[:, :C]
    lap = adjlap[:, C:]

    vd, vt = jax.pure_callback(
        _host_eig_cheb,
        (jax.ShapeDtypeStruct((K * C, C), jnp.float32),
         jax.ShapeDtypeStruct((C, C), jnp.float32)),
        lap, packed["gk"])

    out_t = gconv_head(vd, vt, xcpack, packed["mean_sel"],
                       packed["w1t"], packed["b1t"], packed["w2t"], packed["b2t"])
    return out_t.T, adj                                        # (B, 2) probs, (C, C) adj


if __name__ == "__main__":
    params = init_params(seed=0)
    packed = pack_params(params)
    x_flat = jax.random.normal(jax.random.PRNGKey(0), (B * C, F), jnp.float32)

    out, adj = chebnet_forward(x_flat, packed)
    out = jax.block_until_ready(out)
    adj = jax.block_until_ready(adj)

    assert out.shape == (B, 2) and adj.shape == (C, C)
    assert bool(jnp.all(jnp.isfinite(out))) and bool(jnp.all(jnp.isfinite(adj)))
    print("KERNEL_OK")
</pallas_src>

<mosaic_0001>
module attributes {stable_mosaic.version = 11 : i64} {
  func.func @_preproc_attn_kernel(%arg0: i32, %arg1: memref<128x128xf32, #tpu.memory_space<vmem>>, %arg2: memref<128x128xf32, #tpu.memory_space<vmem>>, %arg3: memref<1x128xf32, #tpu.memory_space<vmem>>, %arg4: memref<128x128xf32, #tpu.memory_space<vmem>>, %arg5: memref<128x128xf32, #tpu.memory_space<vmem>>, %arg6: memref<64x128xf32, #tpu.memory_space<vmem>>, %arg7: memref<128x64xf32, #tpu.memory_space<vmem>>, %arg8: memref<64x256xf32, #tpu.memory_space<vmem>>, %arg9: memref<64x128xf32, #tpu.memory_space<vmem>>) attributes {dimension_semantics = [#tpu.dimension_semantics<arbitrary>], iteration_bounds = array<i64: 1>, scalar_prefetch = 0 : i64, scratch_operands = 0 : i64, tpu.core_type = #tpu.core_type<tc>, window_params = [{pipeline_mode = #tpu.pipeline_mode<synchronous>, transform_indices = @transform_0, window_bounds = array<i64: 128, 128>}, {pipeline_mode = #tpu.pipeline_mode<synchronous>, transform_indices = @transform_1, window_bounds = array<i64: 128, 128>}, {pipeline_mode = #tpu.pipeline_mode<synchronous>, transform_indices = @transform_2, window_bounds = array<i64: 1, 128>}, {pipeline_mode = #tpu.pipeline_mode<synchronous>, transform_indices = @transform_3, window_bounds = array<i64: 128, 128>}, {pipeline_mode = #tpu.pipeline_mode<synchronous>, transform_indices = @transform_4, window_bounds = array<i64: 128, 128>}, {pipeline_mode = #tpu.pipeline_mode<synchronous>, transform_indices = @transform_5, window_bounds = array<i64: 64, 128>}, {pipeline_mode = #tpu.pipeline_mode<synchronous>, transform_indices = @transform_6, window_bounds = array<i64: 128, 64>}, {pipeline_mode = #tpu.pipeline_mode<synchronous>, transform_indices = @transform_7, window_bounds = array<i64: 64, 256>}, {pipeline_mode = #tpu.pipeline_mode<synchronous>, transform_indices = @transform_8, window_bounds = array<i64: 64, 128>}]} {
    %c0 = arith.constant 0 : index
    %c0_0 = arith.constant 0 : index
    %0 = vector.load %arg1[%c0, %c0_0] : memref<128x128xf32, #tpu.memory_space<vmem>>, vector<128x128xf32>
    %c0_1 = arith.constant 0 : index
    %c0_2 = arith.constant 0 : index
    %1 = vector.load %arg2[%c0_1, %c0_2] : memref<128x128xf32, #tpu.memory_space<vmem>>, vector<128x128xf32>
    %cst = arith.constant dense<0.000000e+00> : vector<128x128xf32>
    %2 = tpu.matmul %0, %1, %cst {dimension_numbers = #tpu.dot_dimension_numbers<[1], [0], [0], [1], [0, 0, 1, 1], [], []>} : vector<128x128xf32>, vector<128x128xf32>, vector<128x128xf32> -> vector<128x128xf32>
    %c0_3 = arith.constant 0 : index
    %c0_4 = arith.constant 0 : index
    %3 = vector.load %arg3[%c0_3, %c0_4] : memref<1x128xf32, #tpu.memory_space<vmem>>, vector<1x128xf32>
    %4 = vector.broadcast %3 : vector<1x128xf32> to vector<128x128xf32>
    %5 = arith.addf %2, %4 : vector<128x128xf32>
    %6 = vector.extract_strided_slice %5 {offsets = [0, 0], sizes = [64, 128], strides = [1, 1]} : vector<128x128xf32> to vector<64x128xf32>
    %c0_5 = arith.constant 0 : index
    %c0_6 = arith.constant 0 : index
    %7 = vector.load %arg8[%c0_5, %c0_6] : memref<64x256xf32, #tpu.memory_space<vmem>>, vector<64x128xf32>
    tpu.vector_store %arg8[%c0_5, %c0_6], %6 {strides = array<i32>} : memref<64x256xf32, #tpu.memory_space<vmem>>, vector<64x128xf32>,
    %8 = vector.extract_strided_slice %5 {offsets = [64, 0], sizes = [64, 128], strides = [1, 1]} : vector<128x128xf32> to vector<64x128xf32>
    %c0_7 = arith.constant 0 : index
    %c128 = arith.constant 128 : index
    %9 = vector.load %arg8[%c0_7, %c128] : memref<64x256xf32, #tpu.memory_space<vmem>>, vector<64x128xf32>
    tpu.vector_store %arg8[%c0_7, %c128], %8 {strides = array<i32>} : memref<64x256xf32, #tpu.memory_space<vmem>>, vector<64x128xf32>,
    %c0_8 = arith.constant 0 : index
    %c0_9 = arith.constant 0 : index
    %10 = vector.load %arg4[%c0_8, %c0_9] : memref<128x128xf32, #tpu.memory_space<vmem>>, vector<128x128xf32>
    %cst_10 = arith.constant dense<0.000000e+00> : vector<128x128xf32>
    %11 = tpu.matmul %5, %10, %cst_10 {dimension_numbers = #tpu.dot_dimension_numbers<[1], [0], [0], [1], [0, 0, 1, 1], [], []>} : vector<128x128xf32>, vector<128x128xf32>, vector<128x128xf32> -> vector<128x128xf32>
    %12 = vector.extract_strided_slice %11 {offsets = [0, 1], sizes = [128, 1], strides = [1, 1]} : vector<128x128xf32> to vector<128x1xf32>
    %13 = vector.extract_strided_slice %11 {offsets = [0, 0], sizes = [128, 1], strides = [1, 1]} : vector<128x128xf32> to vector<128x1xf32>
    %14 = vector.shape_cast %13 : vector<128x1xf32> to vector<128xf32>
    %15 = vector.shape_cast %14 : vector<128xf32> to vector<1x128xf32>
    %16 = vector.broadcast %12 : vector<128x1xf32> to vector<128x128xf32>
    %17 = vector.broadcast %15 : vector<1x128xf32> to vector<128x128xf32>
    %18 = arith.mulf %16, %17 : vector<128x128xf32>
    %cst_11 = arith.constant 0.000000e+00 : f32
    %19 = vector.broadcast %cst_11 : f32 to vector<128x128xf32>
    %20 = arith.cmpf ogt, %18, %19 : vector<128x128xf32>
    %cst_12 = arith.constant 2.000000e-01 : f32
    %21 = vector.broadcast %cst_12 : f32 to vector<128x128xf32>
    %22 = arith.mulf %21, %18 : vector<128x128xf32>
    %23 = arith.select %20, %18, %22 : vector<128x128xi1>, vector<128x128xf32>
    %c0_13 = arith.constant 0 : index
    %c0_14 = arith.constant 0 : index
    %24 = vector.load %arg5[%c0_13, %c0_14] : memref<128x128xf32, #tpu.memory_space<vmem>>, vector<128x128xf32>
    %25 = arith.addf %23, %24 : vector<128x128xf32>
    %cst_15 = arith.constant dense<0xFF800000> : vector<128xf32>
    %26 = vector.multi_reduction <maximumf>, %25, %cst_15 [1] : vector<128x128xf32> to vector<128xf32>
    %27 = vector.shape_cast %26 : vector<128xf32> to vector<128x1xf32>
    %28 = vector.broadcast %27 : vector<128x1xf32> to vector<128x128xf32>
    %29 = arith.subf %25, %28 : vector<128x128xf32>
    %30 = math.exp %29 : vector<128x128xf32>
    %cst_16 = arith.constant dense<0.000000e+00> : vector<128xf32>
    %31 = vector.multi_reduction <add>, %30, %cst_16 [1] : vector<128x128xf32> to vector<128xf32>
    %32 = vector.shape_cast %31 : vector<128xf32> to vector<128x1xf32>
    %33 = tpu.reciprocal %32 {approx = true} : vector<128x1xf32> -> vector<128x1xf32>
    %34 = vector.broadcast %33 : vector<128x1xf32> to vector<128x128xf32>
    %35 = arith.mulf %30, %34 : vector<128x128xf32>
    %c0_17 = arith.constant 0 : index
    %c0_18 = arith.constant 0 : index
    %36 = vector.load %arg7[%c0_17, %c0_18] : memref<128x64xf32, #tpu.memory_space<vmem>>, vector<128x64xf32>
    %cst_19 = arith.constant dense<0.000000e+00> : vector<128x64xf32>
    %37 = tpu.matmul %35, %36, %cst_19 {dimension_numbers = #tpu.dot_dimension_numbers<[1], [0], [0], [1], [0, 0, 1, 1], [], []>} : vector<128x128xf32>, vector<128x64xf32>, vector<128x64xf32> -> vector<128x64xf32>
    %c0_20 = arith.constant 0 : index
    %c0_21 = arith.constant 0 : index
    %38 = vector.load %arg6[%c0_20, %c0_21] : memref<64x128xf32, #tpu.memory_space<vmem>>, vector<64x128xf32>
    %cst_22 = arith.constant dense<0.000000e+00> : vector<64x64xf32>
    %39 = tpu.matmul %38, %37, %cst_22 {dimension_numbers = #tpu.dot_dimension_numbers<[1], [0], [0], [1], [0, 0, 1, 1], [], []>} : vector<64x128xf32>, vector<128x64xf32>, vector<64x64xf32> -> vector<64x64xf32>
    %cst_23 = arith.constant 5.000000e-01 : f32
    %40 = vector.broadcast %cst_23 : f32 to vector<64x64xf32>
    %41 = arith.mulf %40, %39 : vector<64x64xf32>
    %42 = tpu.transpose %41, [1, 0] : vector<64x64xf32> -> vector<64x64xf32>
    %43 = arith.addf %41, %42 : vector<64x64xf32>
    %cst_24 = arith.constant 5.000000e-01 : f32
    %44 = vector.broadcast %cst_24 : f32 to vector<64x64xf32>
    %45 = arith.mulf %44, %43 : vector<64x64xf32>
    %cst_25 = arith.constant dense<0.000000e+00> : vector<64xf32>
    %46 = vector.multi_reduction <add>, %45, %cst_25 [0] : vector<64x64xf32> to vector<64xf32>
    %47 = vector.shape_cast %46 : vector<64xf32> to vector<1x64xf32>
    %48 = vector.broadcast %47 : vector<1x64xf32> to vector<64x64xf32>
    %49 = arith.subf %48, %45 : vector<64x64xf32>
    %50 = tpu.concatenate %45, %49 in 1 : vector<64x64xf32>, vector<64x64xf32> -> vector<64x128xf32>
    %c0_26 = arith.constant 0 : index
    %c0_27 = arith.constant 0 : index
    %51 = vector.load %arg9[%c0_26, %c0_27] : memref<64x128xf32, #tpu.memory_space<vmem>>, vector<64x128xf32>
    tpu.vector_store %arg9[%c0_26, %c0_27], %50 {strides = array<i32>} : memref<64x128xf32, #tpu.memory_space<vmem>>, vector<64x128xf32>,
    return
  }
  func.func @transform_0(%arg0: i32) -> (i32, i32) {
    %c0_i32 = arith.constant 0 : i32
    %c0_i32_0 = arith.constant 0 : i32
    %c0_i32_1 = arith.constant 0 : i32
    return %c0_i32, %c0_i32_0 : i32, i32
  }
  func.func @transform_1(%arg0: i32) -> (i32, i32) {
    %c0_i32 = arith.constant 0 : i32
    %c0_i32_0 = arith.constant 0 : i32
    %c0_i32_1 = arith.constant 0 : i32
    return %c0_i32, %c0_i32_0 : i32, i32
  }
  func.func @transform_2(%arg0: i32) -> (i32, i32) {
    %c0_i32 = arith.constant 0 : i32
    %c0_i32_0 = arith.constant 0 : i32
    %c0_i32_1 = arith.constant 0 : i32
    return %c0_i32, %c0_i32_0 : i32, i32
  }
  func.func @transform_3(%arg0: i32) -> (i32, i32) {
    %c0_i32 = arith.constant 0 : i32
    %c0_i32_0 = arith.constant 0 : i32
    %c0_i32_1 = arith.constant 0 : i32
    return %c0_i32, %c0_i32_0 : i32, i32
  }
  func.func @transform_4(%arg0: i32) -> (i32, i32) {
    %c0_i32 = arith.constant 0 : i32
    %c0_i32_0 = arith.constant 0 : i32
    %c0_i32_1 = arith.constant 0 : i32
    return %c0_i32, %c0_i32_0 : i32, i32
  }
  func.func @transform_5(%arg0: i32) -> (i32, i32) {
    %c0_i32 = arith.constant 0 : i32
    %c0_i32_0 = arith.constant 0 : i32
    %c0_i32_1 = arith.constant 0 : i32
    return %c0_i32, %c0_i32_0 : i32, i32
  }
  func.func @transform_6(%arg0: i32) -> (i32, i32) {
    %c0_i32 = arith.constant 0 : i32
    %c0_i32_0 = arith.constant 0 : i32
    %c0_i32_1 = arith.constant 0 : i32
    return %c0_i32, %c0_i32_0 : i32, i32
  }
  func.func @transform_7(%arg0: i32) -> (i32, i32) {
    %c0_i32 = arith.constant 0 : i32
    %c0_i32_0 = arith.constant 0 : i32
    %c0_i32_1 = arith.constant 0 : i32
    return %c0_i32, %c0_i32_0 : i32, i32
  }
  func.func @transform_8(%arg0: i32) -> (i32, i32) {
    %c0_i32 = arith.constant 0 : i32
    %c0_i32_0 = arith.constant 0 : i32
    %c0_i32_1 = arith.constant 0 : i32
    return %c0_i32, %c0_i32_0 : i32, i32
  }
}

module attributes {stable_mosaic.version = 11 : i64} {
  func.func @_gconv_head_kernel(%arg0: i32, %arg1: memref<448x64xf32, #tpu.memory_space<vmem>>, %arg2: memref<64x64xf32, #tpu.memory_space<vmem>>, %arg3: memref<64x256xf32, #tpu.memory_space<vmem>>, %arg4: memref<256x2xf32, #tpu.memory_space<vmem>>, %arg5: memref<8x448xf32, #tpu.memory_space<vmem>>, %arg6: memref<8x1xf32, #tpu.memory_space<vmem>>, %arg7: memref<2x8xf32, #tpu.memory_space<vmem>>, %arg8: memref<2x1xf32, #tpu.memory_space<vmem>>, %arg9: memref<2x2xf32, #tpu.memory_space<vmem>>) attributes {dimension_semantics = [#tpu.dimension_semantics<arbitrary>], iteration_bounds = array<i64: 1>, scalar_prefetch = 0 : i64, scratch_operands = 0 : i64, tpu.core_type = #tpu.core_type<tc>, window_params = [{pipeline_mode = #tpu.pipeline_mode<synchronous>, transform_indices = @transform_0, window_bounds = array<i64: 448, 64>}, {pipeline_mode = #tpu.pipeline_mode<synchronous>, transform_indices = @transform_1, window_bounds = array<i64: 64, 64>}, {pipeline_mode = #tpu.pipeline_mode<synchronous>, transform_indices = @transform_2, window_bounds = array<i64: 64, 256>}, {pipeline_mode = #tpu.pipeline_mode<synchronous>, transform_indices = @transform_3, window_bounds = array<i64: 256, 2>}, {pipeline_mode = #tpu.pipeline_mode<synchronous>, transform_indices = @transform_4, window_bounds = array<i64: 8, 448>}, {pipeline_mode = #tpu.pipeline_mode<synchronous>, transform_indices = @transform_5, window_bounds = array<i64: 8, 1>}, {pipeline_mode = #tpu.pipeline_mode<synchronous>, transform_indices = @transform_6, window_bounds = array<i64: 2, 8>}, {pipeline_mode = #tpu.pipeline_mode<synchronous>, transform_indices = @transform_7, window_bounds = array<i64: 2, 1>}, {pipeline_mode = #tpu.pipeline_mode<synchronous>, transform_indices = @transform_8, window_bounds = array<i64: 2, 2>}]} {
    %c0 = arith.constant 0 : index
    %c0_0 = arith.constant 0 : index
    %0 = vector.load %arg2[%c0, %c0_0] : memref<64x64xf32, #tpu.memory_space<vmem>>, vector<64x64xf32>
    %c0_1 = arith.constant 0 : index
    %c0_2 = arith.constant 0 : index
    %1 = vector.load %arg3[%c0_1, %c0_2] : memref<64x256xf32, #tpu.memory_space<vmem>>, vector<64x256xf32>
    %cst = arith.constant dense<0.000000e+00> : vector<64x256xf32>
    %2 = tpu.matmul %0, %1, %cst {dimension_numbers = #tpu.dot_dimension_numbers<[1], [0], [0], [1], [0, 0, 1, 1], [], []>} : vector<64x64xf32>, vector<64x256xf32>, vector<64x256xf32> -> vector<64x256xf32>
    %c0_3 = arith.constant 0 : index
    %c0_4 = arith.constant 0 : index
    %3 = vector.load %arg1[%c0_3, %c0_4] : memref<448x64xf32, #tpu.memory_space<vmem>>, vector<448x64xf32>
    %cst_5 = arith.constant dense<0.000000e+00> : vector<448x256xf32>
    %4 = tpu.matmul %3, %2, %cst_5 {dimension_numbers = #tpu.dot_dimension_numbers<[1], [0], [0], [1], [0, 0, 1, 1], [], []>} : vector<448x64xf32>, vector<64x256xf32>, vector<448x256xf32> -> vector<448x256xf32>
    %cst_6 = arith.constant 0.000000e+00 : f32
    %5 = vector.broadcast %cst_6 : f32 to vector<448x256xf32>
    %6 = arith.maximumf %4, %5 : vector<448x256xf32>
    %c0_7 = arith.constant 0 : index
    %c0_8 = arith.constant 0 : index
    %7 = vector.load %arg4[%c0_7, %c0_8] : memref<256x2xf32, #tpu.memory_space<vmem>>, vector<256x2xf32>
    %cst_9 = arith.constant dense<0.000000e+00> : vector<448x2xf32>
    %8 = tpu.matmul %6, %7, %cst_9 {dimension_numbers = #tpu.dot_dimension_numbers<[1], [0], [0], [1], [0, 0, 1, 1], [], []>} : vector<448x256xf32>, vector<256x2xf32>, vector<448x2xf32> -> vector<448x2xf32>
    %c0_10 = arith.constant 0 : index
    %c0_11 = arith.constant 0 : index
    %9 = vector.load %arg5[%c0_10, %c0_11] : memref<8x448xf32, #tpu.memory_space<vmem>>, vector<8x448xf32>
    %cst_12 = arith.constant dense<0.000000e+00> : vector<8x2xf32>
    %10 = tpu.matmul %9, %8, %cst_12 {dimension_numbers = #tpu.dot_dimension_numbers<[1], [0], [0], [1], [0, 0, 1, 1], [], []>} : vector<8x448xf32>, vector<448x2xf32>, vector<8x2xf32> -> vector<8x2xf32>
    %c0_13 = arith.constant 0 : index
    %c0_14 = arith.constant 0 : index
    %11 = vector.load %arg6[%c0_13, %c0_14] : memref<8x1xf32, #tpu.memory_space<vmem>>, vector<8x1xf32>
    %12 = vector.broadcast %11 : vector<8x1xf32> to vector<8x2xf32>
    %13 = arith.addf %10, %12 : vector<8x2xf32>
    %14 = math.tanh %13 : vector<8x2xf32>
    %c0_15 = arith.constant 0 : index
    %c0_16 = arith.constant 0 : index
    %15 = vector.load %arg7[%c0_15, %c0_16] : memref<2x8xf32, #tpu.memory_space<vmem>>, vector<2x8xf32>
    %cst_17 = arith.constant dense<0.000000e+00> : vector<2x2xf32>
    %16 = tpu.matmul %15, %14, %cst_17 {dimension_numbers = #tpu.dot_dimension_numbers<[1], [0], [0], [1], [0, 0, 1, 1], [], []>} : vector<2x8xf32>, vector<8x2xf32>, vector<2x2xf32> -> vector<2x2xf32>
    %c0_18 = arith.constant 0 : index
    %c0_19 = arith.constant 0 : index
    %17 = vector.load %arg8[%c0_18, %c0_19] : memref<2x1xf32, #tpu.memory_space<vmem>>, vector<2x1xf32>
    %18 = vector.broadcast %17 : vector<2x1xf32> to vector<2x2xf32>
    %19 = arith.addf %16, %18 : vector<2x2xf32>
    %cst_20 = arith.constant dense<0xFF800000> : vector<2xf32>
    %20 = vector.multi_reduction <maximumf>, %19, %cst_20 [0] : vector<2x2xf32> to vector<2xf32>
    %21 = vector.shape_cast %20 : vector<2xf32> to vector<1x2xf32>
    %22 = vector.broadcast %21 : vector<1x2xf32> to vector<2x2xf32>
    %23 = arith.subf %19, %22 : vector<2x2xf32>
    %24 = math.exp %23 : vector<2x2xf32>
    %cst_21 = arith.constant dense<0.000000e+00> : vector<2xf32>
    %25 = vector.multi_reduction <add>, %24, %cst_21 [0] : vector<2x2xf32> to vector<2xf32>
    %26 = vector.shape_cast %25 : vector<2xf32> to vector<1x2xf32>
    %27 = vector.broadcast %26 : vector<1x2xf32> to vector<2x2xf32>
    %28 = arith.divf %24, %27 : vector<2x2xf32>
    %c0_22 = arith.constant 0 : index
    %c0_23 = arith.constant 0 : index
    %29 = vector.load %arg9[%c0_22, %c0_23] : memref<2x2xf32, #tpu.memory_space<vmem>>, vector<2x2xf32>
    tpu.vector_store %arg9[%c0_22, %c0_23], %28 {strides = array<i32>} : memref<2x2xf32, #tpu.memory_space<vmem>>, vector<2x2xf32>,
    return
  }
  func.func @transform_0(%arg0: i32) -> (i32, i32) {
    %c0_i32 = arith.constant 0 : i32
    %c0_i32_0 = arith.constant 0 : i32
    %c0_i32_1 = arith.constant 0 : i32
    return %c0_i32, %c0_i32_0 : i32, i32
  }
  func.func @transform_1(%arg0: i32) -> (i32, i32) {
    %c0_i32 = arith.constant 0 : i32
    %c0_i32_0 = arith.constant 0 : i32
    %c0_i32_1 = arith.constant 0 : i32
    return %c0_i32, %c0_i32_0 : i32, i32
  }
  func.func @transform_2(%arg0: i32) -> (i32, i32) {
    %c0_i32 = arith.constant 0 : i32
    %c0_i32_0 = arith.constant 0 : i32
    %c0_i32_1 = arith.constant 0 : i32
    return %c0_i32, %c0_i32_0 : i32, i32
  }
  func.func @transform_3(%arg0: i32) -> (i32, i32) {
    %c0_i32 = arith.constant 0 : i32
    %c0_i32_0 = arith.constant 0 : i32
    %c0_i32_1 = arith.constant 0 : i32
    return %c0_i32, %c0_i32_0 : i32, i32
  }
  func.func @transform_4(%arg0: i32) -> (i32, i32) {
    %c0_i32 = arith.constant 0 : i32
    %c0_i32_0 = arith.constant 0 : i32
    %c0_i32_1 = arith.constant 0 : i32
    return %c0_i32, %c0_i32_0 : i32, i32
  }
  func.func @transform_5(%arg0: i32) -> (i32, i32) {
    %c0_i32 = arith.constant 0 : i32
    %c0_i32_0 = arith.constant 0 : i32
    %c0_i32_1 = arith.constant 0 : i32
    return %c0_i32, %c0_i32_0 : i32, i32
  }
  func.func @transform_6(%arg0: i32) -> (i32, i32) {
    %c0_i32 = arith.constant 0 : i32
    %c0_i32_0 = arith.constant 0 : i32
    %c0_i32_1 = arith.constant 0 : i32
    return %c0_i32, %c0_i32_0 : i32, i32
  }
  func.func @transform_7(%arg0: i32) -> (i32, i32) {
    %c0_i32 = arith.constant 0 : i32
    %c0_i32_0 = arith.constant 0 : i32
    %c0_i32_1 = arith.constant 0 : i32
    return %c0_i32, %c0_i32_0 : i32, i32
  }
  func.func @transform_8(%arg0: i32) -> (i32, i32) {
    %c0_i32 = arith.constant 0 : i32
    %c0_i32_0 = arith.constant 0 : i32
    %c0_i32_1 = arith.constant 0 : i32
    return %c0_i32, %c0_i32_0 : i32, i32
  }
}

</mosaic_0001>

<llo_original>
// kernel: chebnet_forward.3
$region0: #{chebnet_forward.3}
  #allocation0 [shape = 'u32[]', space=smem, size = 0x4, offset = 0x4, fixed_abs, tag = 'smem constant byte address 0x4 - core index']
  #allocation1 [shape = 'u32[72,128]{1,0:T(1,128)}', space=vmem, size = 0x9000, scoped, tag = 'internal scratch']
  %s0 = inlined_call_operand.vmem [shape: f32[448,64], index: 0, kind: input, shape index: {}]
  %s1 = inlined_call_operand.hbm [shape: f32[64,64], index: 1, kind: input, shape index: {}]
  %s2 = inlined_call_operand.vmem [shape: f32[64,256], index: 2, kind: input, shape index: {}]
  %s3 = inlined_call_operand.vmem [shape: f32[256,2], index: 3, kind: input, shape index: {}]
  %s4 = inlined_call_operand.vmem [shape: f32[8,448], index: 4, kind: input, shape index: {}]
  %s5 = inlined_call_operand.vmem [shape: f32[8,1], index: 5, kind: input, shape index: {}]
  %s6 = inlined_call_operand.vmem [shape: f32[2,8], index: 6, kind: input, shape index: {}]
  %s7 = inlined_call_operand.vmem [shape: f32[2,1], index: 7, kind: input, shape index: {}]
  %s8 = inlined_call_operand.vmem [shape: f32[2,2], index: 8, kind: output, shape index: {}]
  %s9 = sld [smem:[#allocation0]]
  $region46: #{chebnet_forward.3} parent=0
    _
  %s11 = ssub.s32 1, %s9
  %s12 = scalar_select 0, %s11, %s9
  $region1: #{chebnet_forward.3} parent=0
    #allocation2 [shape = 'u8[32768]{0}', space=vmem, size = 0x8000, scoped, tag = 'input window, operand 1, single buffered']
    #allocation3 [shape = 's32[1]{0}', space=sflag, size = 0x4, scoped, tag = 'scoped memory for chebnet_forward.3']
    %13 = vsyncpa [#allocation3], 0
    // Predicated region
    $region2: #{chebnet_forward.3} parent=1 // pred_check
      _
    $region3: #{chebnet_forward.3} parent=1 // pred_check_branch
      %15 = sbr.rel (0) target = $region5
    $region4: #{chebnet_forward.3} parent=1 // pred_region
      _
    $region5: #{chebnet_forward.3} parent=1 // pred_fallthru
      _
    // Predicated region
    $region6: #{chebnet_forward.3} parent=1 // pred_check
      _
    $region7: #{chebnet_forward.3} parent=1 // pred_check_branch
      %17 = sbr.rel (0) target = $region9
    $region8: #{chebnet_forward.3} parent=1 // pred_region
      %19 = vsyncadd [#allocation3], 0
      %s20 = sshll.u32 %s1, 4
      %s21 = int_to_ptr.hbm [resolvable:$true] %s20
      %s22 = sshll.u32 [#allocation2], 4
      %s23 = int_to_ptr.vmem [resolvable:$true] %s22
      %28 = dma.hbm_to_vmem [thread:$0]  %s21, 1024, %s23, [#allocation3], 128, 128, 8
    $region9: #{chebnet_forward.3} parent=1 // pred_fallthru
      _
    // Predicated region
    $region10: #{chebnet_forward.3} parent=1 // pred_check
      _
    $region11: #{chebnet_forward.3} parent=1 // pred_check_branch
      %30 = sbr.rel (0) target = $region13
    $region12: #{chebnet_forward.3} parent=1 // pred_region
      _
    $region13: #{chebnet_forward.3} parent=1 // pred_fallthru
      _
    // Predicated region
    $region14: #{chebnet_forward.3} parent=1 // pred_check
      _
    $region15: #{chebnet_forward.3} parent=1 // pred_check_branch
      %32 = sbr.rel (0) target = $region17
    $region16: #{chebnet_forward.3} parent=1 // pred_region
      _
    $region17: #{chebnet_forward.3} parent=1 // pred_fallthru
      _
    // Predicated region
    $region18: #{chebnet_forward.3} parent=1 // pred_check
      _
    $region19: #{chebnet_forward.3} parent=1 // pred_check_branch
      %34 = sbr.rel (0) target = $region21
    $region20: #{chebnet_forward.3} parent=1 // pred_region
      _
    $region21: #{chebnet_forward.3} parent=1 // pred_fallthru
      _
    // Predicated region
    $region22: #{chebnet_forward.3} parent=1 // pred_check
      _
    $region23: #{chebnet_forward.3} parent=1 // pred_check_branch
      %36 = sbr.rel (0) target = $region25
    $region24: #{chebnet_forward.3} parent=1 // pred_region
      _
    $region25: #{chebnet_forward.3} parent=1 // pred_fallthru
      _
    // Predicated region
    $region26: #{chebnet_forward.3} parent=1 // pred_check
      _
    $region27: #{chebnet_forward.3} parent=1 // pred_check_branch
      %38 = sbr.rel (0) target = $region29
    $region28: #{chebnet_forward.3} parent=1 // pred_region
      _
    $region29: #{chebnet_forward.3} parent=1 // pred_fallthru
      _
    // Predicated region
    $region30: #{chebnet_forward.3} parent=1 // pred_check
      _
    $region31: #{chebnet_forward.3} parent=1 // pred_check_branch
      %40 = sbr.rel (0) target = $region33
    $region32: #{chebnet_forward.3} parent=1 // pred_region
      _
    $region33: #{chebnet_forward.3} parent=1 // pred_fallthru
      _
    // Predicated region
    $region34: #{chebnet_forward.3} parent=1 // pred_check
      _
    $region35: #{chebnet_forward.3} parent=1 // pred_check_branch
      %42 = sbr.rel (0) target = $region37
    $region36: #{chebnet_forward.3} parent=1 // pred_region
      %44 = dma.done [#allocation3], 1024
    $region37: #{chebnet_forward.3} parent=1 // pred_fallthru
      _
    %v45 = vld [vmem:[#allocation2] sm:$0xff]
    %v46 = vld [vmem:[#allocation2 + $0x8] sm:$0xff]
    %v47 = vld [vmem:[#allocation2 + $0x10] sm:$0xff]
    %v48 = vld [vmem:[#allocation2 + $0x18] sm:$0xff]
    %v49 = vld [vmem:[#allocation2 + $0x20] sm:$0xff]
    %v50 = vld [vmem:[#allocation2 + $0x28] sm:$0xff]
    %v51 = vld [vmem:[#allocation2 + $0x30] sm:$0xff]
    %v52 = vld [vmem:[#allocation2 + $0x38] sm:$0xff]
    %v53 = vld [vmem:[%s2] sm:$0xff]
    %v54 = vld [vmem:[%s2 + $0x8] sm:$0xff]
    %v55 = vld [vmem:[%s2 + $0x10] sm:$0xff]
    %v56 = vld [vmem:[%s2 + $0x18] sm:$0xff]
    %v57 = vld [vmem:[%s2 + $0x20] sm:$0xff]
    %v58 = vld [vmem:[%s2 + $0x28] sm:$0xff]
    %v59 = vld [vmem:[%s2 + $0x30] sm:$0xff]
    %v60 = vld [vmem:[%s2 + $0x38] sm:$0xff]
    %v61 = vld [vmem:[%s2 + $0x40] sm:$0xff]
    %v62 = vld [vmem:[%s2 + $0x48] sm:$0xff]
    %v63 = vld [vmem:[%s2 + $0x50] sm:$0xff]
    %v64 = vld [vmem:[%s2 + $0x58] sm:$0xff]
    %v65 = vld [vmem:[%s2 + $0x60] sm:$0xff]
    %v66 = vld [vmem:[%s2 + $0x68] sm:$0xff]
    %v67 = vld [vmem:[%s2 + $0x70] sm:$0xff]
    %v68 = vld [vmem:[%s2 + $0x78] sm:$0xff]
    %vm69 = vcmask 523264
    %v71 = vsel %vm69, %v45, 0
    %v74 = vsel %vm69, %v46, 0
    %v77 = vsel %vm69, %v47, 0
    %v80 = vsel %vm69, %v48, 0
    %v83 = vsel %vm69, %v49, 0
    %v86 = vsel %vm69, %v50, 0
    %v89 = vsel %vm69, %v51, 0
    %v92 = vsel %vm69, %v52, 0
    %94 = vmatpush.msra.mxu0 0.0
    %95 = vmatpush.msra.mxu0 0.0
    %96 = vmatpush.msra.mxu0 0.0
    %97 = vmatpush.msra.mxu0 0.0
    %98 = vmatpush.msra.mxu0 0.0
    %99 = vmatpush.msra.mxu0 0.0
    %100 = vmatpush.msra.mxu0 0.0
    %101 = vmatpush.msra.mxu0 0.0
    %102 = vmatpush.msra.mxu0 %v67
    %103 = vmatpush.msra.mxu0 %v65
    %104 = vmatpush.msra.mxu0 %v63
    %105 = vmatpush.msra.mxu0 %v61
    %106 = vmatpush.msra.mxu0 %v59
    %107 = vmatpush.msra.mxu0 %v57
    %108 = vmatpush.msra.mxu0 %v55
    %109 = vmatpush.msra.mxu0 %v53
    %110 = vmatmul.f32.gmra.mxu0 %v71
    %v111 = vpop.f32.mrf.mxu0
    %v112 = vadd.f32 0.0, %v111
    %113 = vmatmul.f32.gmra.mxu0 %v74
    %v114 = vpop.f32.mrf.mxu0
    %v115 = vadd.f32 0.0, %v114
    %116 = vmatmul.f32.gmra.mxu0 %v77
    %v117 = vpop.f32.mrf.mxu0
    %v118 = vadd.f32 0.0, %v117
    %119 = vmatmul.f32.gmra.mxu0 %v80
    %v120 = vpop.f32.mrf.mxu0
    %v121 = vadd.f32 0.0, %v120
    %122 = vmatmul.f32.gmra.mxu0 %v83
    %v123 = vpop.f32.mrf.mxu0
    %v124 = vadd.f32 0.0, %v123
    %125 = vmatmul.f32.gmra.mxu0 %v86
    %v126 = vpop.f32.mrf.mxu0
    %v127 = vadd.f32 0.0, %v126
    %128 = vmatmul.f32.gmra.mxu0 %v89
    %v129 = vpop.f32.mrf.mxu0
    %v130 = vadd.f32 0.0, %v129
    %131 = vmatmul.f32.gmra.mxu0 %v92
    %v132 = vpop.f32.mrf.mxu0
    %v133 = vadd.f32 0.0, %v132
    %134 = vdwg.mxu0
    %135 = vmatpush.msra.mxu0 0.0
    %136 = vmatpush.msra.mxu0 0.0
    %137 = vmatpush.msra.mxu0 0.0
    %138 = vmatpush.msra.mxu0 0.0
    %139 = vmatpush.msra.mxu0 0.0
    %140 = vmatpush.msra.mxu0 0.0
    %141 = vmatpush.msra.mxu0 0.0
    %142 = vmatpush.msra.mxu0 0.0
    %143 = vmatpush.msra.mxu0 %v68
    %144 = vmatpush.msra.mxu0 %v66
    %145 = vmatpush.msra.mxu0 %v64
    %146 = vmatpush.msra.mxu0 %v62
    %147 = vmatpush.msra.mxu0 %v60
    %148 = vmatpush.msra.mxu0 %v58
    %149 = vmatpush.msra.mxu0 %v56
    %150 = vmatpush.msra.mxu0 %v54
    %151 = vmatmul.f32.gmra.mxu0 %v71
    %v152 = vpop.f32.mrf.mxu0
    %v153 = vadd.f32 0.0, %v152
    %154 = vmatmul.f32.gmra.mxu0 %v74
    %v155 = vpop.f32.mrf.mxu0
    %v156 = vadd.f32 0.0, %v155
    %157 = vmatmul.f32.gmra.mxu0 %v77
    %v158 = vpop.f32.mrf.mxu0
    %v159 = vadd.f32 0.0, %v158
    %160 = vmatmul.f32.gmra.mxu0 %v80
    %v161 = vpop.f32.mrf.mxu0
    %v162 = vadd.f32 0.0, %v161
    %163 = vmatmul.f32.gmra.mxu0 %v83
    %v164 = vpop.f32.mrf.mxu0
    %v165 = vadd.f32 0.0, %v164
    %166 = vmatmul.f32.gmra.mxu0 %v86
    %v167 = vpop.f32.mrf.mxu0
    %v168 = vadd.f32 0.0, %v167
    %169 = vmatmul.f32.gmra.mxu0 %v89
    %v170 = vpop.f32.mrf.mxu0
    %v171 = vadd.f32 0.0, %v170
    %172 = vmatmul.f32.gmra.mxu0 %v92
    %v173 = vpop.f32.mrf.mxu0
    %v174 = vadd.f32 0.0, %v173
    %175 = vdwg.mxu0
    %v176 = vld [vmem:[%s0] sm:$0xff]
    %v177 = vld [vmem:[%s0 + $0x8] sm:$0xff]
    %v178 = vld [vmem:[%s0 + $0x10] sm:$0xff]
    %v179 = vld [vmem:[%s0 + $0x18] sm:$0xff]
    %v180 = vld [vmem:[%s0 + $0x20] sm:$0xff]
    %v181 = vld [vmem:[%s0 + $0x28] sm:$0xff]
    %v182 = vld [vmem:[%s0 + $0x30] sm:$0xff]
    %v183 = vld [vmem:[%s0 + $0x38] sm:$0xff]
    %v184 = vld [vmem:[%s0 + $0x40] sm:$0xff]
    %v185 = vld [vmem:[%s0 + $0x48] sm:$0xff]
    %v186 = vld [vmem:[%s0 + $0x50] sm:$0xff]
    %v187 = vld [vmem:[%s0 + $0x58] sm:$0xff]
    %v188 = vld [vmem:[%s0 + $0x60] sm:$0xff]
    %v189 = vld [vmem:[%s0 + $0x68] sm:$0xff]
    %v190 = vld [vmem:[%s0 + $0x70] sm:$0xff]
    %v191 = vld [vmem:[%s0 + $0x78] sm:$0xff]
    %v192 = vld [vmem:[%s0 + $0x80] sm:$0xff]
    %v193 = vld [vmem:[%s0 + $0x88] sm:$0xff]
    %v194 = vld [vmem:[%s0 + $0x90] sm:$0xff]
    %v195 = vld [vmem:[%s0 + $0x98] sm:$0xff]
    %v196 = vld [vmem:[%s0 + $0xa0] sm:$0xff]
    %v197 = vld [vmem:[%s0 + $0xa8] sm:$0xff]
    %v198 = vld [vmem:[%s0 + $0xb0] sm:$0xff]
    %v199 = vld [vmem:[%s0 + $0xb8] sm:$0xff]
    %v200 = vld [vmem:[%s0 + $0xc0] sm:$0xff]
    %v201 = vld [vmem:[%s0 + $0xc8] sm:$0xff]
    %v202 = vld [vmem:[%s0 + $0xd0] sm:$0xff]
    %v203 = vld [vmem:[%s0 + $0xd8] sm:$0xff]
    %v204 = vld [vmem:[%s0 + $0xe0] sm:$0xff]
    %v205 = vld [vmem:[%s0 + $0xe8] sm:$0xff]
    %v206 = vld [vmem:[%s0 + $0xf0] sm:$0xff]
    %v207 = vld [vmem:[%s0 + $0xf8] sm:$0xff]
    %v208 = vld [vmem:[%s0 + $0x100] sm:$0xff]
    %v209 = vld [vmem:[%s0 + $0x108] sm:$0xff]
    %v210 = vld [vmem:[%s0 + $0x110] sm:$0xff]
    %v211 = vld [vmem:[%s0 + $0x118] sm:$0xff]
    %v212 = vld [vmem:[%s0 + $0x120] sm:$0xff]
    %v213 = vld [vmem:[%s0 + $0x128] sm:$0xff]
    %v214 = vld [vmem:[%s0 + $0x130] sm:$0xff]
    %v215 = vld [vmem:[%s0 + $0x138] sm:$0xff]
    %v216 = vld [vmem:[%s0 + $0x140] sm:$0xff]
    %v217 = vld [vmem:[%s0 + $0x148] sm:$0xff]
    %v218 = vld [vmem:[%s0 + $0x150] sm:$0xff]
    %v219 = vld [vmem:[%s0 + $0x158] sm:$0xff]
    %v220 = vld [vmem:[%s0 + $0x160] sm:$0xff]
    %v221 = vld [vmem:[%s0 + $0x168] sm:$0xff]
    %v222 = vld [vmem:[%s0 + $0x170] sm:$0xff]
    %v223 = vld [vmem:[%s0 + $0x178] sm:$0xff]
    %v224 = vld [vmem:[%s0 + $0x180] sm:$0xff]
    %v225 = vld [vmem:[%s0 + $0x188] sm:$0xff]
    %v226 = vld [vmem:[%s0 + $0x190] sm:$0xff]
    %v227 = vld [vmem:[%s0 + $0x198] sm:$0xff]
    %v228 = vld [vmem:[%s0 + $0x1a0] sm:$0xff]
    %v229 = vld [vmem:[%s0 + $0x1a8] sm:$0xff]
    %v230 = vld [vmem:[%s0 + $0x1b0] sm:$0xff]
    %v231 = vld [vmem:[%s0 + $0x1b8] sm:$0xff]
    %v233 = vsel %vm69, %v176, 0
    %v236 = vsel %vm69, %v177, 0
    %v239 = vsel %vm69, %v178, 0
    %v242 = vsel %vm69, %v179, 0
    %v245 = vsel %vm69, %v180, 0
    %v248 = vsel %vm69, %v181, 0
    %v251 = vsel %vm69, %v182, 0
    %v254 = vsel %vm69, %v183, 0
    %v257 = vsel %vm69, %v184, 0
    %v260 = vsel %vm69, %v185, 0
    %v263 = vsel %vm69, %v186, 0
    %v266 = vsel %vm69, %v187, 0
    %v269 = vsel %vm69, %v188, 0
    %v272 = vsel %vm69, %v189, 0
    %v275 = vsel %vm69, %v190, 0
    %v278 = vsel %vm69, %v191, 0
    %v281 = vsel %vm69, %v192, 0
    %v284 = vsel %vm69, %v193, 0
    %v287 = vsel %vm69, %v194, 0
    %v290 = vsel %vm69, %v195, 0
    %v293 = vsel %vm69, %v196, 0
    %v296 = vsel %vm69, %v197, 0
    %v299 = vsel %vm69, %v198, 0
    %v302 = vsel %vm69, %v199, 0
    %v305 = vsel %vm69, %v200, 0
    %v308 = vsel %vm69, %v201, 0
    %v311 = vsel %vm69, %v202, 0
    %v314 = vsel %vm69, %v203, 0
    %v317 = vsel %vm69, %v204, 0
    %v320 = vsel %vm69, %v205, 0
    %v323 = vsel %vm69, %v206, 0
    %v326 = vsel %vm69, %v207, 0
    %v329 = vsel %vm69, %v208, 0
    %v332 = vsel %vm69, %v209, 0
    %v335 = vsel %vm69, %v210, 0
    %v338 = vsel %vm69, %v211, 0
    %v341 = vsel %vm69, %v212, 0
    %v344 = vsel %vm69, %v213, 0
    %v347 = vsel %vm69, %v214, 0
    %v350 = vsel %vm69, %v215, 0
    %v353 = vsel %vm69, %v216, 0
    %v356 = vsel %vm69, %v217, 0
    %v359 = vsel %vm69, %v218, 0
    %v362 = vsel %vm69, %v219, 0
    %v365 = vsel %vm69, %v220, 0
    %v368 = vsel %vm69, %v221, 0
    %v371 = vsel %vm69, %v222, 0
    %v374 = vsel %vm69, %v223, 0
    %v377 = vsel %vm69, %v224, 0
    %v380 = vsel %vm69, %v225, 0
    %v383 = vsel %vm69, %v226, 0
    %v386 = vsel %vm69, %v227, 0
    %v389 = vsel %vm69, %v228, 0
    %v392 = vsel %vm69, %v229, 0
    %v395 = vsel %vm69, %v230, 0
    %v398 = vsel %vm69, %v231, 0
    %400 = vmatpush.msra.mxu0 0.0
    %401 = vmatpush.msra.mxu0 0.0
    %402 = vmatpush.msra.mxu0 0.0
    %403 = vmatpush.msra.mxu0 0.0
    %404 = vmatpush.msra.mxu0 0.0
    %405 = vmatpush.msra.mxu0 0.0
    %406 = vmatpush.msra.mxu0 0.0
    %407 = vmatpush.msra.mxu0 0.0
    %408 = vmatpush.msra.mxu0 %v133
    %409 = vmatpush.msra.mxu0 %v130
    %410 = vmatpush.msra.mxu0 %v127
    %411 = vmatpush.msra.mxu0 %v124
    %412 = vmatpush.msra.mxu0 %v121
    %413 = vmatpush.msra.mxu0 %v118
    %414 = vmatpush.msra.mxu0 %v115
    %415 = vmatpush.msra.mxu0 %v112
    %416 = vmatmul.f32.gmra.mxu0 %v233
    %v417 = vpop.f32.mrf.mxu0
    %v418 = vadd.f32 0.0, %v417
    %419 = vmatmul.f32.gmra.mxu0 %v236
    %v420 = vpop.f32.mrf.mxu0
    %v421 = vadd.f32 0.0, %v420
    %422 = vmatmul.f32.gmra.mxu0 %v239
    %v423 = vpop.f32.mrf.mxu0
    %v424 = vadd.f32 0.0, %v423
    %425 = vmatmul.f32.gmra.mxu0 %v242
    %v426 = vpop.f32.mrf.mxu0
    %v427 = vadd.f32 0.0, %v426
    %428 = vmatmul.f32.gmra.mxu0 %v245
    %v429 = vpop.f32.mrf.mxu0
    %v430 = vadd.f32 0.0, %v429
    %431 = vmatmul.f32.gmra.mxu0 %v248
    %v432 = vpop.f32.mrf.mxu0
    %v433 = vadd.f32 0.0, %v432
    %434 = vmatmul.f32.gmra.mxu0 %v251
    %v435 = vpop.f32.mrf.mxu0
    %v436 = vadd.f32 0.0, %v435
    %437 = vmatmul.f32.gmra.mxu0 %v254
    %v438 = vpop.f32.mrf.mxu0
    %v439 = vadd.f32 0.0, %v438
    %440 = vmatmul.f32.gmra.mxu0 %v257
    %v441 = vpop.f32.mrf.mxu0
    %v442 = vadd.f32 0.0, %v441
    %443 = vmatmul.f32.gmra.mxu0 %v260
    %v444 = vpop.f32.mrf.mxu0
    %v445 = vadd.f32 0.0, %v444
    %446 = vmatmul.f32.gmra.mxu0 %v263
    %v447 = vpop.f32.mrf.mxu0
    %v448 = vadd.f32 0.0, %v447
    %449 = vmatmul.f32.gmra.mxu0 %v266
    %v450 = vpop.f32.mrf.mxu0
    %v451 = vadd.f32 0.0, %v450
    %452 = vmatmul.f32.gmra.mxu0 %v269
    %v453 = vpop.f32.mrf.mxu0
    %v454 = vadd.f32 0.0, %v453
    %455 = vmatmul.f32.gmra.mxu0 %v272
    %v456 = vpop.f32.mrf.mxu0
    %v457 = vadd.f32 0.0, %v456
    %458 = vmatmul.f32.gmra.mxu0 %v275
    %v459 = vpop.f32.mrf.mxu0
    %v460 = vadd.f32 0.0, %v459
    %461 = vmatmul.f32.gmra.mxu0 %v278
    %v462 = vpop.f32.mrf.mxu0
    %v463 = vadd.f32 0.0, %v462
    %464 = vmatmul.f32.gmra.mxu0 %v281
    %v465 = vpop.f32.mrf.mxu0
    %v466 = vadd.f32 0.0, %v465
    %467 = vmatmul.f32.gmra.mxu0 %v284
    %v468 = vpop.f32.mrf.mxu0
    %v469 = vadd.f32 0.0, %v468
    %470 = vmatmul.f32.gmra.mxu0 %v287
    %v471 = vpop.f32.mrf.mxu0
    %v472 = vadd.f32 0.0, %v471
    %473 = vmatmul.f32.gmra.mxu0 %v290
    %v474 = vpop.f32.mrf.mxu0
    %v475 = vadd.f32 0.0, %v474
    %476 = vmatmul.f32.gmra.mxu0 %v293
    %v477 = vpop.f32.mrf.mxu0
    %v478 = vadd.f32 0.0, %v477
    %479 = vmatmul.f32.gmra.mxu0 %v296
    %v480 = vpop.f32.mrf.mxu0
    %v481 = vadd.f32 0.0, %v480
    %482 = vmatmul.f32.gmra.mxu0 %v299
    %v483 = vpop.f32.mrf.mxu0
    %v484 = vadd.f32 0.0, %v483
    %485 = vmatmul.f32.gmra.mxu0 %v302
    %v486 = vpop.f32.mrf.mxu0
    %v487 = vadd.f32 0.0, %v486
    %488 = vmatmul.f32.gmra.mxu0 %v305
    %v489 = vpop.f32.mrf.mxu0
    %v490 = vadd.f32 0.0, %v489
    %491 = vmatmul.f32.gmra.mxu0 %v308
    %v492 = vpop.f32.mrf.mxu0
    %v493 = vadd.f32 0.0, %v492
    %494 = vmatmul.f32.gmra.mxu0 %v311
    %v495 = vpop.f32.mrf.mxu0
    %v496 = vadd.f32 0.0, %v495
    %497 = vmatmul.f32.gmra.mxu0 %v314
    %v498 = vpop.f32.mrf.mxu0
    %v499 = vadd.f32 0.0, %v498
    %500 = vmatmul.f32.gmra.mxu0 %v317
    %v501 = vpop.f32.mrf.mxu0
    %v502 = vadd.f32 0.0, %v501
    %503 = vmatmul.f32.gmra.mxu0 %v320
    %v504 = vpop.f32.mrf.mxu0
    %v505 = vadd.f32 0.0, %v504
    %506 = vmatmul.f32.gmra.mxu0 %v323
    %v507 = vpop.f32.mrf.mxu0
    %v508 = vadd.f32 0.0, %v507
    %509 = vmatmul.f32.gmra.mxu0 %v326
    %v510 = vpop.f32.mrf.mxu0
    %v511 = vadd.f32 0.0, %v510
    %512 = vmatmul.f32.gmra.mxu0 %v329
    %v513 = vpop.f32.mrf.mxu0
    %v514 = vadd.f32 0.0, %v513
    %515 = vmatmul.f32.gmra.mxu0 %v332
    %v516 = vpop.f32.mrf.mxu0
    %v517 = vadd.f32 0.0, %v516
    %518 = vmatmul.f32.gmra.mxu0 %v335
    %v519 = vpop.f32.mrf.mxu0
    %v520 = vadd.f32 0.0, %v519
    %521 = vmatmul.f32.gmra.mxu0 %v338
    %v522 = vpop.f32.mrf.mxu0
    %v523 = vadd.f32 0.0, %v522
    %524 = vmatmul.f32.gmra.mxu0 %v341
    %v525 = vpop.f32.mrf.mxu0
    %v526 = vadd.f32 0.0, %v525
    %527 = vmatmul.f32.gmra.mxu0 %v344
    %v528 = vpop.f32.mrf.mxu0
    %v529 = vadd.f32 0.0, %v528
    %530 = vmatmul.f32.gmra.mxu0 %v347
    %v531 = vpop.f32.mrf.mxu0
    %v532 = vadd.f32 0.0, %v531
    %533 = vmatmul.f32.gmra.mxu0 %v350
    %v534 = vpop.f32.mrf.mxu0
    %v535 = vadd.f32 0.0, %v534
    %536 = vmatmul.f32.gmra.mxu0 %v353
    %v537 = vpop.f32.mrf.mxu0
    %v538 = vadd.f32 0.0, %v537
    %539 = vmatmul.f32.gmra.mxu0 %v356
    %v540 = vpop.f32.mrf.mxu0
    %v541 = vadd.f32 0.0, %v540
    %542 = vmatmul.f32.gmra.mxu0 %v359
    %v543 = vpop.f32.mrf.mxu0
    %v544 = vadd.f32 0.0, %v543
    %545 = vmatmul.f32.gmra.mxu0 %v362
    %v546 = vpop.f32.mrf.mxu0
    %v547 = vadd.f32 0.0, %v546
    %548 = vmatmul.f32.gmra.mxu0 %v365
    %v549 = vpop.f32.mrf.mxu0
    %v550 = vadd.f32 0.0, %v549
    %551 = vmatmul.f32.gmra.mxu0 %v368
    %v552 = vpop.f32.mrf.mxu0
    %v553 = vadd.f32 0.0, %v552
    %554 = vmatmul.f32.gmra.mxu0 %v371
    %v555 = vpop.f32.mrf.mxu0
    %v556 = vadd.f32 0.0, %v555
    %557 = vmatmul.f32.gmra.mxu0 %v374
    %v558 = vpop.f32.mrf.mxu0
    %v559 = vadd.f32 0.0, %v558
    %560 = vmatmul.f32.gmra.mxu0 %v377
    %v561 = vpop.f32.mrf.mxu0
    %v562 = vadd.f32 0.0, %v561
    %563 = vmatmul.f32.gmra.mxu0 %v380
    %v564 = vpop.f32.mrf.mxu0
    %v565 = vadd.f32 0.0, %v564
    %566 = vmatmul.f32.gmra.mxu0 %v383
    %v567 = vpop.f32.mrf.mxu0
    %v568 = vadd.f32 0.0, %v567
    %569 = vmatmul.f32.gmra.mxu0 %v386
    %v570 = vpop.f32.mrf.mxu0
    %v571 = vadd.f32 0.0, %v570
    %572 = vmatmul.f32.gmra.mxu0 %v389
    %v573 = vpop.f32.mrf.mxu0
    %v574 = vadd.f32 0.0, %v573
    %575 = vmatmul.f32.gmra.mxu0 %v392
    %v576 = vpop.f32.mrf.mxu0
    %v577 = vadd.f32 0.0, %v576
    %578 = vmatmul.f32.gmra.mxu0 %v395
    %v579 = vpop.f32.mrf.mxu0
    %v580 = vadd.f32 0.0, %v579
    %581 = vmatmul.f32.gmra.mxu0 %v398
    %v582 = vpop.f32.mrf.mxu0
    %v583 = vadd.f32 0.0, %v582
    %584 = vdwg.mxu0
    %585 = vmatpush.msra.mxu0 0.0
    %586 = vmatpush.msra.mxu0 0.0
    %587 = vmatpush.msra.mxu0 0.0
    %588 = vmatpush.msra.mxu0 0.0
    %589 = vmatpush.msra.mxu0 0.0
    %590 = vmatpush.msra.mxu0 0.0
    %591 = vmatpush.msra.mxu0 0.0
    %592 = vmatpush.msra.mxu0 0.0
    %593 = vmatpush.msra.mxu0 %v174
    %594 = vmatpush.msra.mxu0 %v171
    %595 = vmatpush.msra.mxu0 %v168
    %596 = vmatpush.msra.mxu0 %v165
    %597 = vmatpush.msra.mxu0 %v162
    %598 = vmatpush.msra.mxu0 %v159
    %599 = vmatpush.msra.mxu0 %v156
    %600 = vmatpush.msra.mxu0 %v153
    %601 = vmatmul.f32.gmra.mxu0 %v233
    %v602 = vpop.f32.mrf.mxu0
    %v603 = vadd.f32 0.0, %v602
    %604 = vmatmul.f32.gmra.mxu0 %v236
    %v605 = vpop.f32.mrf.mxu0
    %v606 = vadd.f32 0.0, %v605
    %607 = vmatmul.f32.gmra.mxu0 %v239
    %v608 = vpop.f32.mrf.mxu0
    %v609 = vadd.f32 0.0, %v608
    %610 = vmatmul.f32.gmra.mxu0 %v242
    %v611 = vpop.f32.mrf.mxu0
    %v612 = vadd.f32 0.0, %v611
    %613 = vmatmul.f32.gmra.mxu0 %v245
    %v614 = vpop.f32.mrf.mxu0
    %v615 = vadd.f32 0.0, %v614
    %616 = vmatmul.f32.gmra.mxu0 %v248
    %v617 = vpop.f32.mrf.mxu0
    %v618 = vadd.f32 0.0, %v617
    %619 = vmatmul.f32.gmra.mxu0 %v251
    %v620 = vpop.f32.mrf.mxu0
    %v621 = vadd.f32 0.0, %v620
    %622 = vmatmul.f32.gmra.mxu0 %v254
    %v623 = vpop.f32.mrf.mxu0
    %v624 = vadd.f32 0.0, %v623
    %625 = vmatmul.f32.gmra.mxu0 %v257
    %v626 = vpop.f32.mrf.mxu0
    %v627 = vadd.f32 0.0, %v626
    %628 = vmatmul.f32.gmra.mxu0 %v260
    %v629 = vpop.f32.mrf.mxu0
    %v630 = vadd.f32 0.0, %v629
    %631 = vmatmul.f32.gmra.mxu0 %v263
    %v632 = vpop.f32.mrf.mxu0
    %v633 = vadd.f32 0.0, %v632
    %634 = vmatmul.f32.gmra.mxu0 %v266
    %v635 = vpop.f32.mrf.mxu0
    %v636 = vadd.f32 0.0, %v635
    %637 = vmatmul.f32.gmra.mxu0 %v269
    %v638 = vpop.f32.mrf.mxu0
    %v639 = vadd.f32 0.0, %v638
    %640 = vmatmul.f32.gmra.mxu0 %v272
    %v641 = vpop.f32.mrf.mxu0
    %v642 = vadd.f32 0.0, %v641
    %643 = vmatmul.f32.gmra.mxu0 %v275
    %v644 = vpop.f32.mrf.mxu0
    %v645 = vadd.f32 0.0, %v644
    %646 = vmatmul.f32.gmra.mxu0 %v278
    %v647 = vpop.f32.mrf.mxu0
    %v648 = vadd.f32 0.0, %v647
    %649 = vmatmul.f32.gmra.mxu0 %v281
    %v650 = vpop.f32.mrf.mxu0
    %v651 = vadd.f32 0.0, %v650
    %652 = vmatmul.f32.gmra.mxu0 %v284
    %v653 = vpop.f32.mrf.mxu0
    %v654 = vadd.f32 0.0, %v653
    %655 = vmatmul.f32.gmra.mxu0 %v287
    %v656 = vpop.f32.mrf.mxu0
    %v657 = vadd.f32 0.0, %v656
    %658 = vmatmul.f32.gmra.mxu0 %v290
    %v659 = vpop.f32.mrf.mxu0
    %v660 = vadd.f32 0.0, %v659
    %661 = vmatmul.f32.gmra.mxu0 %v293
    %v662 = vpop.f32.mrf.mxu0
    %v663 = vadd.f32 0.0, %v662
    %664 = vmatmul.f32.gmra.mxu0 %v296
    %v665 = vpop.f32.mrf.mxu0
    %v666 = vadd.f32 0.0, %v665
    %667 = vmatmul.f32.gmra.mxu0 %v299
    %v668 = vpop.f32.mrf.mxu0
    %v669 = vadd.f32 0.0, %v668
    %670 = vmatmul.f32.gmra.mxu0 %v302
    %v671 = vpop.f32.mrf.mxu0
    %v672 = vadd.f32 0.0, %v671
    %673 = vmatmul.f32.gmra.mxu0 %v305
    %v674 = vpop.f32.mrf.mxu0
    %v675 = vadd.f32 0.0, %v674
    %676 = vmatmul.f32.gmra.mxu0 %v308
    %v677 = vpop.f32.mrf.mxu0
    %v678 = vadd.f32 0.0, %v677
    %679 = vmatmul.f32.gmra.mxu0 %v311
    %v680 = vpop.f32.mrf.mxu0
    %v681 = vadd.f32 0.0, %v680
    %682 = vmatmul.f32.gmra.mxu0 %v314
    %v683 = vpop.f32.mrf.mxu0
    %v684 = vadd.f32 0.0, %v683
    %685 = vmatmul.f32.gmra.mxu0 %v317
    %v686 = vpop.f32.mrf.mxu0
    %v687 = vadd.f32 0.0, %v686
    %688 = vmatmul.f32.gmra.mxu0 %v320
    %v689 = vpop.f32.mrf.mxu0
    %v690 = vadd.f32 0.0, %v689
    %691 = vmatmul.f32.gmra.mxu0 %v323
    %v692 = vpop.f32.mrf.mxu0
    %v693 = vadd.f32 0.0, %v692
    %694 = vmatmul.f32.gmra.mxu0 %v326
    %v695 = vpop.f32.mrf.mxu0
    %v696 = vadd.f32 0.0, %v695
    %697 = vmatmul.f32.gmra.mxu0 %v329
    %v698 = vpop.f32.mrf.mxu0
    %v699 = vadd.f32 0.0, %v698
    %700 = vmatmul.f32.gmra.mxu0 %v332
    %v701 = vpop.f32.mrf.mxu0
    %v702 = vadd.f32 0.0, %v701
    %703 = vmatmul.f32.gmra.mxu0 %v335
    %v704 = vpop.f32.mrf.mxu0
    %v705 = vadd.f32 0.0, %v704
    %706 = vmatmul.f32.gmra.mxu0 %v338
    %v707 = vpop.f32.mrf.mxu0
    %v708 = vadd.f32 0.0, %v707
    %709 = vmatmul.f32.gmra.mxu0 %v341
    %v710 = vpop.f32.mrf.mxu0
    %v711 = vadd.f32 0.0, %v710
    %712 = vmatmul.f32.gmra.mxu0 %v344
    %v713 = vpop.f32.mrf.mxu0
    %v714 = vadd.f32 0.0, %v713
    %715 = vmatmul.f32.gmra.mxu0 %v347
    %v716 = vpop.f32.mrf.mxu0
    %v717 = vadd.f32 0.0, %v716
    %718 = vmatmul.f32.gmra.mxu0 %v350
    %v719 = vpop.f32.mrf.mxu0
    %v720 = vadd.f32 0.0, %v719
    %721 = vmatmul.f32.gmra.mxu0 %v353
    %v722 = vpop.f32.mrf.mxu0
    %v723 = vadd.f32 0.0, %v722
    %724 = vmatmul.f32.gmra.mxu0 %v356
    %v725 = vpop.f32.mrf.mxu0
    %v726 = vadd.f32 0.0, %v725
    %727 = vmatmul.f32.gmra.mxu0 %v359
    %v728 = vpop.f32.mrf.mxu0
    %v729 = vadd.f32 0.0, %v728
    %730 = vmatmul.f32.gmra.mxu0 %v362
    %v731 = vpop.f32.mrf.mxu0
    %v732 = vadd.f32 0.0, %v731
    %733 = vmatmul.f32.gmra.mxu0 %v365
    %v734 = vpop.f32.mrf.mxu0
    %v735 = vadd.f32 0.0, %v734
    %736 = vmatmul.f32.gmra.mxu0 %v368
    %v737 = vpop.f32.mrf.mxu0
    %v738 = vadd.f32 0.0, %v737
    %739 = vmatmul.f32.gmra.mxu0 %v371
    %v740 = vpop.f32.mrf.mxu0
    %v741 = vadd.f32 0.0, %v740
    %742 = vmatmul.f32.gmra.mxu0 %v374
    %v743 = vpop.f32.mrf.mxu0
    %v744 = vadd.f32 0.0, %v743
    %745 = vmatmul.f32.gmra.mxu0 %v377
    %v746 = vpop.f32.mrf.mxu0
    %v747 = vadd.f32 0.0, %v746
    %748 = vmatmul.f32.gmra.mxu0 %v380
    %v749 = vpop.f32.mrf.mxu0
    %v750 = vadd.f32 0.0, %v749
    %751 = vmatmul.f32.gmra.mxu0 %v383
    %v752 = vpop.f32.mrf.mxu0
    %v753 = vadd.f32 0.0, %v752
    %754 = vmatmul.f32.gmra.mxu0 %v386
    %v755 = vpop.f32.mrf.mxu0
    %v756 = vadd.f32 0.0, %v755
    %757 = vmatmul.f32.gmra.mxu0 %v389
    %v758 = vpop.f32.mrf.mxu0
    %v759 = vadd.f32 0.0, %v758
    %760 = vmatmul.f32.gmra.mxu0 %v392
    %v761 = vpop.f32.mrf.mxu0
    %v762 = vadd.f32 0.0, %v761
    %763 = vmatmul.f32.gmra.mxu0 %v395
    %v764 = vpop.f32.mrf.mxu0
    %v765 = vadd.f32 0.0, %v764
    %766 = vmatmul.f32.gmra.mxu0 %v398
    %v767 = vpop.f32.mrf.mxu0
    %v768 = vadd.f32 0.0, %v767
    %769 = vdwg.mxu0
    %v770 = vmax.f32 %v418, 0.0
    %v771 = vmax.f32 %v603, 0.0
    %v772 = vmax.f32 %v421, 0.0
    %v773 = vmax.f32 %v606, 0.0
    %v774 = vmax.f32 %v424, 0.0
    %v775 = vmax.f32 %v609, 0.0
    %v776 = vmax.f32 %v427, 0.0
    %v777 = vmax.f32 %v612, 0.0
    %v778 = vmax.f32 %v430, 0.0
    %v779 = vmax.f32 %v615, 0.0
    %v780 = vmax.f32 %v433, 0.0
    %v781 = vmax.f32 %v618, 0.0
    %v782 = vmax.f32 %v436, 0.0
    %v783 = vmax.f32 %v621, 0.0
    %v784 = vmax.f32 %v439, 0.0
    %v785 = vmax.f32 %v624, 0.0
    %v786 = vmax.f32 %v442, 0.0
    %v787 = vmax.f32 %v627, 0.0
    %v788 = vmax.f32 %v445, 0.0
    %v789 = vmax.f32 %v630, 0.0
    %v790 = vmax.f32 %v448, 0.0
    %v791 = vmax.f32 %v633, 0.0
    %v792 = vmax.f32 %v451, 0.0
    %v793 = vmax.f32 %v636, 0.0
    %v794 = vmax.f32 %v454, 0.0
    %v795 = vmax.f32 %v639, 0.0
    %v796 = vmax.f32 %v457, 0.0
    %v797 = vmax.f32 %v642, 0.0
    %v798 = vmax.f32 %v460, 0.0
    %v799 = vmax.f32 %v645, 0.0
    %v800 = vmax.f32 %v463, 0.0
    %v801 = vmax.f32 %v648, 0.0
    %v802 = vmax.f32 %v466, 0.0
    %v803 = vmax.f32 %v651, 0.0
    %v804 = vmax.f32 %v469, 0.0
    %v805 = vmax.f32 %v654, 0.0
    %v806 = vmax.f32 %v472, 0.0
    %v807 = vmax.f32 %v657, 0.0
    %v808 = vmax.f32 %v475, 0.0
    %v809 = vmax.f32 %v660, 0.0
    %v810 = vmax.f32 %v478, 0.0
    %v811 = vmax.f32 %v663, 0.0
    %v812 = vmax.f32 %v481, 0.0
    %v813 = vmax.f32 %v666, 0.0
    %v814 = vmax.f32 %v484, 0.0
    %v815 = vmax.f32 %v669, 0.0
    %v816 = vmax.f32 %v487, 0.0
    %v817 = vmax.f32 %v672, 0.0
    %v818 = vmax.f32 %v490, 0.0
    %v819 = vmax.f32 %v675, 0.0
    %v820 = vmax.f32 %v493, 0.0
    %v821 = vmax.f32 %v678, 0.0
    %v822 = vmax.f32 %v496, 0.0
    %v823 = vmax.f32 %v681, 0.0
    %v824 = vmax.f32 %v499, 0.0
    %v825 = vmax.f32 %v684, 0.0
    %v826 = vmax.f32 %v502, 0.0
    %v827 = vmax.f32 %v687, 0.0
    %v828 = vmax.f32 %v505, 0.0
    %v829 = vmax.f32 %v690, 0.0
    %v830 = vmax.f32 %v508, 0.0
    %v831 = vmax.f32 %v693, 0.0
    %v832 = vmax.f32 %v511, 0.0
    %v833 = vmax.f32 %v696, 0.0
    %v834 = vmax.f32 %v514, 0.0
    %v835 = vmax.f32 %v699, 0.0
    %v836 = vmax.f32 %v517, 0.0
    %v837 = vmax.f32 %v702, 0.0
    %v838 = vmax.f32 %v520, 0.0
    %v839 = vmax.f32 %v705, 0.0
    %v840 = vmax.f32 %v523, 0.0
    %v841 = vmax.f32 %v708, 0.0
    %v842 = vmax.f32 %v526, 0.0
    %v843 = vmax.f32 %v711, 0.0
    %v844 = vmax.f32 %v529, 0.0
    %v845 = vmax.f32 %v714, 0.0
    %v846 = vmax.f32 %v532, 0.0
    %v847 = vmax.f32 %v717, 0.0
    %v848 = vmax.f32 %v535, 0.0
    %v849 = vmax.f32 %v720, 0.0
    %v850 = vmax.f32 %v538, 0.0
    %v851 = vmax.f32 %v723, 0.0
    %v852 = vmax.f32 %v541, 0.0
    %v853 = vmax.f32 %v726, 0.0
    %v854 = vmax.f32 %v544, 0.0
    %v855 = vmax.f32 %v729, 0.0
    %v856 = vmax.f32 %v547, 0.0
    %v857 = vmax.f32 %v732, 0.0
    %v858 = vmax.f32 %v550, 0.0
    %v859 = vmax.f32 %v735, 0.0
    %v860 = vmax.f32 %v553, 0.0
    %v861 = vmax.f32 %v738, 0.0
    %v862 = vmax.f32 %v556, 0.0
    %v863 = vmax.f32 %v741, 0.0
    %v864 = vmax.f32 %v559, 0.0
    %v865 = vmax.f32 %v744, 0.0
    %v866 = vmax.f32 %v562, 0.0
    %v867 = vmax.f32 %v747, 0.0
    %v868 = vmax.f32 %v565, 0.0
    %v869 = vmax.f32 %v750, 0.0
    %v870 = vmax.f32 %v568, 0.0
    %v871 = vmax.f32 %v753, 0.0
    %v872 = vmax.f32 %v571, 0.0
    %v873 = vmax.f32 %v756, 0.0
    %v874 = vmax.f32 %v574, 0.0
    %v875 = vmax.f32 %v759, 0.0
    %v876 = vmax.f32 %v577, 0.0
    %v877 = vmax.f32 %v762, 0.0
    %v878 = vmax.f32 %v580, 0.0
    %v879 = vmax.f32 %v765, 0.0
    %v880 = vmax.f32 %v583, 0.0
    %v881 = vmax.f32 %v768, 0.0
    %v882 = vld [vmem:[%s3] sm:$0xff]
    %v883 = vld [vmem:[%s3 + $0x8] sm:$0xff]
    %v884 = vld [vmem:[%s3 + $0x10] sm:$0xff]
    %v885 = vld [vmem:[%s3 + $0x18] sm:$0xff]
    %v886 = vld [vmem:[%s3 + $0x20] sm:$0xff]
    %v887 = vld [vmem:[%s3 + $0x28] sm:$0xff]
    %v888 = vld [vmem:[%s3 + $0x30] sm:$0xff]
    %v889 = vld [vmem:[%s3 + $0x38] sm:$0xff]
    %v890 = vld [vmem:[%s3 + $0x40] sm:$0xff]
    %v891 = vld [vmem:[%s3 + $0x48] sm:$0xff]
    %v892 = vld [vmem:[%s3 + $0x50] sm:$0xff]
    %v893 = vld [vmem:[%s3 + $0x58] sm:$0xff]
    %v894 = vld [vmem:[%s3 + $0x60] sm:$0xff]
    %v895 = vld [vmem:[%s3 + $0x68] sm:$0xff]
    %v896 = vld [vmem:[%s3 + $0x70] sm:$0xff]
    %v897 = vld [vmem:[%s3 + $0x78] sm:$0xff]
    %v898 = vld [vmem:[%s3 + $0x80] sm:$0xff]
    %v899 = vld [vmem:[%s3 + $0x88] sm:$0xff]
    %v900 = vld [vmem:[%s3 + $0x90] sm:$0xff]
    %v901 = vld [vmem:[%s3 + $0x98] sm:$0xff]
    %v902 = vld [vmem:[%s3 + $0xa0] sm:$0xff]
    %v903 = vld [vmem:[%s3 + $0xa8] sm:$0xff]
    %v904 = vld [vmem:[%s3 + $0xb0] sm:$0xff]
    %v905 = vld [vmem:[%s3 + $0xb8] sm:$0xff]
    %v906 = vld [vmem:[%s3 + $0xc0] sm:$0xff]
    %v907 = vld [vmem:[%s3 + $0xc8] sm:$0xff]
    %v908 = vld [vmem:[%s3 + $0xd0] sm:$0xff]
    %v909 = vld [vmem:[%s3 + $0xd8] sm:$0xff]
    %v910 = vld [vmem:[%s3 + $0xe0] sm:$0xff]
    %v911 = vld [vmem:[%s3 + $0xe8] sm:$0xff]
    %v912 = vld [vmem:[%s3 + $0xf0] sm:$0xff]
    %v913 = vld [vmem:[%s3 + $0xf8] sm:$0xff]
    %914 = vmatpush.msra.mxu0 %v897
    %915 = vmatpush.msra.mxu0 %v896
    %916 = vmatpush.msra.mxu0 %v895
    %917 = vmatpush.msra.mxu0 %v894
    %918 = vmatpush.msra.mxu0 %v893
    %919 = vmatpush.msra.mxu0 %v892
    %920 = vmatpush.msra.mxu0 %v891
    %921 = vmatpush.msra.mxu0 %v890
    %922 = vmatpush.msra.mxu0 %v889
    %923 = vmatpush.msra.mxu0 %v888
    %924 = vmatpush.msra.mxu0 %v887
    %925 = vmatpush.msra.mxu0 %v886
    %926 = vmatpush.msra.mxu0 %v885
    %927 = vmatpush.msra.mxu0 %v884
    %928 = vmatpush.msra.mxu0 %v883
    %929 = vmatpush.msra.mxu0 %v882
    %930 = vmatmul.f32.gmra.mxu0 %v770
    %v931 = vpop.f32.mrf.mxu0
    %v932 = vadd.f32 0.0, %v931
    %933 = vmatmul.f32.gmra.mxu0 %v772
    %v934 = vpop.f32.mrf.mxu0
    %v935 = vadd.f32 0.0, %v934
    %936 = vmatmul.f32.gmra.mxu0 %v774
    %v937 = vpop.f32.mrf.mxu0
    %v938 = vadd.f32 0.0, %v937
    %939 = vmatmul.f32.gmra.mxu0 %v776
    %v940 = vpop.f32.mrf.mxu0
    %v941 = vadd.f32 0.0, %v940
    %942 = vmatmul.f32.gmra.mxu0 %v778
    %v943 = vpop.f32.mrf.mxu0
    %v944 = vadd.f32 0.0, %v943
    %945 = vmatmul.f32.gmra.mxu0 %v780
    %v946 = vpop.f32.mrf.mxu0
    %v947 = vadd.f32 0.0, %v946
    %948 = vmatmul.f32.gmra.mxu0 %v782
    %v949 = vpop.f32.mrf.mxu0
    %v950 = vadd.f32 0.0, %v949
    %951 = vmatmul.f32.gmra.mxu0 %v784
    %v952 = vpop.f32.mrf.mxu0
    %v953 = vadd.f32 0.0, %v952
    %954 = vmatmul.f32.gmra.mxu0 %v786
    %v955 = vpop.f32.mrf.mxu0
    %v956 = vadd.f32 0.0, %v955
    %957 = vmatmul.f32.gmra.mxu0 %v788
    %v958 = vpop.f32.mrf.mxu0
    %v959 = vadd.f32 0.0, %v958
    %960 = vmatmul.f32.gmra.mxu0 %v790
    %v961 = vpop.f32.mrf.mxu0
    %v962 = vadd.f32 0.0, %v961
    %963 = vmatmul.f32.gmra.mxu0 %v792
    %v964 = vpop.f32.mrf.mxu0
    %v965 = vadd.f32 0.0, %v964
    %966 = vmatmul.f32.gmra.mxu0 %v794
    %v967 = vpop.f32.mrf.mxu0
    %v968 = vadd.f32 0.0, %v967
    %969 = vmatmul.f32.gmra.mxu0 %v796
    %v970 = vpop.f32.mrf.mxu0
    %v971 = vadd.f32 0.0, %v970
    %972 = vmatmul.f32.gmra.mxu0 %v798
    %v973 = vpop.f32.mrf.mxu0
    %v974 = vadd.f32 0.0, %v973
    %975 = vmatmul.f32.gmra.mxu0 %v800
    %v976 = vpop.f32.mrf.mxu0
    %v977 = vadd.f32 0.0, %v976
    %978 = vmatmul.f32.gmra.mxu0 %v802
    %v979 = vpop.f32.mrf.mxu0
    %v980 = vadd.f32 0.0, %v979
    %981 = vmatmul.f32.gmra.mxu0 %v804
    %v982 = vpop.f32.mrf.mxu0
    %v983 = vadd.f32 0.0, %v982
    %984 = vmatmul.f32.gmra.mxu0 %v806
    %v985 = vpop.f32.mrf.mxu0
    %v986 = vadd.f32 0.0, %v985
    %987 = vmatmul.f32.gmra.mxu0 %v808
    %v988 = vpop.f32.mrf.mxu0
    %v989 = vadd.f32 0.0, %v988
    %990 = vmatmul.f32.gmra.mxu0 %v810
    %v991 = vpop.f32.mrf.mxu0
    %v992 = vadd.f32 0.0, %v991
    %993 = vmatmul.f32.gmra.mxu0 %v812
    %v994 = vpop.f32.mrf.mxu0
    %v995 = vadd.f32 0.0, %v994
    %996 = vmatmul.f32.gmra.mxu0 %v814
    %v997 = vpop.f32.mrf.mxu0
    %v998 = vadd.f32 0.0, %v997
    %999 = vmatmul.f32.gmra.mxu0 %v816
    %v1000 = vpop.f32.mrf.mxu0
    %v1001 = vadd.f32 0.0, %v1000
    %1002 = vmatmul.f32.gmra.mxu0 %v818
    %v1003 = vpop.f32.mrf.mxu0
    %v1004 = vadd.f32 0.0, %v1003
    %1005 = vmatmul.f32.gmra.mxu0 %v820
    %v1006 = vpop.f32.mrf.mxu0
    %v1007 = vadd.f32 0.0, %v1006
    %1008 = vmatmul.f32.gmra.mxu0 %v822
    %v1009 = vpop.f32.mrf.mxu0
    %v1010 = vadd.f32 0.0, %v1009
    %1011 = vmatmul.f32.gmra.mxu0 %v824
    %v1012 = vpop.f32.mrf.mxu0
    %v1013 = vadd.f32 0.0, %v1012
    %1014 = vmatmul.f32.gmra.mxu0 %v826
    %v1015 = vpop.f32.mrf.mxu0
    %v1016 = vadd.f32 0.0, %v1015
    %1017 = vmatmul.f32.gmra.mxu0 %v828
    %v1018 = vpop.f32.mrf.mxu0
    %v1019 = vadd.f32 0.0, %v1018
    %1020 = vmatmul.f32.gmra.mxu0 %v830
    %v1021 = vpop.f32.mrf.mxu0
    %v1022 = vadd.f32 0.0, %v1021
    %1023 = vmatmul.f32.gmra.mxu0 %v832
    %v1024 = vpop.f32.mrf.mxu0
    %v1025 = vadd.f32 0.0, %v1024
    %1026 = vmatmul.f32.gmra.mxu0 %v834
    %v1027 = vpop.f32.mrf.mxu0
    %v1028 = vadd.f32 0.0, %v1027
    %1029 = vmatmul.f32.gmra.mxu0 %v836
    %v1030 = vpop.f32.mrf.mxu0
    %v1031 = vadd.f32 0.0, %v1030
    %1032 = vmatmul.f32.gmra.mxu0 %v838
    %v1033 = vpop.f32.mrf.mxu0
    %v1034 = vadd.f32 0.0, %v1033
    %1035 = vmatmul.f32.gmra.mxu0 %v840
    %v1036 = vpop.f32.mrf.mxu0
    %v1037 = vadd.f32 0.0, %v1036
    %1038 = vmatmul.f32.gmra.mxu0 %v842
    %v1039 = vpop.f32.mrf.mxu0
    %v1040 = vadd.f32 0.0, %v1039
    %1041 = vmatmul.f32.gmra.mxu0 %v844
    %v1042 = vpop.f32.mrf.mxu0
    %v1043 = vadd.f32 0.0, %v1042
    %1044 = vmatmul.f32.gmra.mxu0 %v846
    %v1045 = vpop.f32.mrf.mxu0
    %v1046 = vadd.f32 0.0, %v1045
    %1047 = vmatmul.f32.gmra.mxu0 %v848
    %v1048 = vpop.f32.mrf.mxu0
    %v1049 = vadd.f32 0.0, %v1048
    %1050 = vmatmul.f32.gmra.mxu0 %v850
    %v1051 = vpop.f32.mrf.mxu0
    %v1052 = vadd.f32 0.0, %v1051
    %1053 = vmatmul.f32.gmra.mxu0 %v852
    %v1054 = vpop.f32.mrf.mxu0
    %v1055 = vadd.f32 0.0, %v1054
    %1056 = vmatmul.f32.gmra.mxu0 %v854
    %v1057 = vpop.f32.mrf.mxu0
    %v1058 = vadd.f32 0.0, %v1057
    %1059 = vmatmul.f32.gmra.mxu0 %v856
    %v1060 = vpop.f32.mrf.mxu0
    %v1061 = vadd.f32 0.0, %v1060
    %1062 = vmatmul.f32.gmra.mxu0 %v858
    %v1063 = vpop.f32.mrf.mxu0
    %v1064 = vadd.f32 0.0, %v1063
    %1065 = vmatmul.f32.gmra.mxu0 %v860
    %v1066 = vpop.f32.mrf.mxu0
    %v1067 = vadd.f32 0.0, %v1066
    %1068 = vmatmul.f32.gmra.mxu0 %v862
    %v1069 = vpop.f32.mrf.mxu0
    %v1070 = vadd.f32 0.0, %v1069
    %1071 = vmatmul.f32.gmra.mxu0 %v864
    %v1072 = vpop.f32.mrf.mxu0
    %v1073 = vadd.f32 0.0, %v1072
    %1074 = vmatmul.f32.gmra.mxu0 %v866
    %v1075 = vpop.f32.mrf.mxu0
    %v1076 = vadd.f32 0.0, %v1075
    %1077 = vmatmul.f32.gmra.mxu0 %v868
    %v1078 = vpop.f32.mrf.mxu0
    %v1079 = vadd.f32 0.0, %v1078
    %1080 = vmatmul.f32.gmra.mxu0 %v870
    %v1081 = vpop.f32.mrf.mxu0
    %v1082 = vadd.f32 0.0, %v1081
    %1083 = vmatmul.f32.gmra.mxu0 %v872
    %v1084 = vpop.f32.mrf.mxu0
    %v1085 = vadd.f32 0.0, %v1084
    %1086 = vmatmul.f32.gmra.mxu0 %v874
    %v1087 = vpop.f32.mrf.mxu0
    %v1088 = vadd.f32 0.0, %v1087
    %1089 = vmatmul.f32.gmra.mxu0 %v876
    %v1090 = vpop.f32.mrf.mxu0
    %v1091 = vadd.f32 0.0, %v1090
    %1092 = vmatmul.f32.gmra.mxu0 %v878
    %v1093 = vpop.f32.mrf.mxu0
    %v1094 = vadd.f32 0.0, %v1093
    %1095 = vmatmul.f32.gmra.mxu0 %v880
    %v1096 = vpop.f32.mrf.mxu0
    %v1097 = vadd.f32 0.0, %v1096
    %1098 = vdwg.mxu0
    %1099 = vmatpush.msra.mxu0 %v913
    %1100 = vmatpush.msra.mxu0 %v912
    %1101 = vmatpush.msra.mxu0 %v911
    %1102 = vmatpush.msra.mxu0 %v910
    %1103 = vmatpush.msra.mxu0 %v909
    %1104 = vmatpush.msra.mxu0 %v908
    %1105 = vmatpush.msra.mxu0 %v907
    %1106 = vmatpush.msra.mxu0 %v906
    %1107 = vmatpush.msra.mxu0 %v905
    %1108 = vmatpush.msra.mxu0 %v904
    %1109 = vmatpush.msra.mxu0 %v903
    %1110 = vmatpush.msra.mxu0 %v902
    %1111 = vmatpush.msra.mxu0 %v901
    %1112 = vmatpush.msra.mxu0 %v900
    %1113 = vmatpush.msra.mxu0 %v899
    %1114 = vmatpush.msra.mxu0 %v898
    %1115 = vmatmul.f32.gmra.mxu0 %v771
    %v1116 = vpop.f32.mrf.mxu0
    %v1117 = vadd.f32 %v932, %v1116
    %1118 = vmatmul.f32.gmra.mxu0 %v773
    %v1119 = vpop.f32.mrf.mxu0
    %v1120 = vadd.f32 %v935, %v1119
    %1121 = vmatmul.f32.gmra.mxu0 %v775
    %v1122 = vpop.f32.mrf.mxu0
    %v1123 = vadd.f32 %v938, %v1122
    %1124 = vmatmul.f32.gmra.mxu0 %v777
    %v1125 = vpop.f32.mrf.mxu0
    %v1126 = vadd.f32 %v941, %v1125
    %1127 = vmatmul.f32.gmra.mxu0 %v779
    %v1128 = vpop.f32.mrf.mxu0
    %v1129 = vadd.f32 %v944, %v1128
    %1130 = vmatmul.f32.gmra.mxu0 %v781
    %v1131 = vpop.f32.mrf.mxu0
    %v1132 = vadd.f32 %v947, %v1131
    %1133 = vmatmul.f32.gmra.mxu0 %v783
    %v1134 = vpop.f32.mrf.mxu0
    %v1135 = vadd.f32 %v950, %v1134
    %1136 = vmatmul.f32.gmra.mxu0 %v785
    %v1137 = vpop.f32.mrf.mxu0
    %v1138 = vadd.f32 %v953, %v1137
    %1139 = vmatmul.f32.gmra.mxu0 %v787
    %v1140 = vpop.f32.mrf.mxu0
    %v1141 = vadd.f32 %v956, %v1140
    %1142 = vmatmul.f32.gmra.mxu0 %v789
    %v1143 = vpop.f32.mrf.mxu0
    %v1144 = vadd.f32 %v959, %v1143
    %1145 = vmatmul.f32.gmra.mxu0 %v791
    %v1146 = vpop.f32.mrf.mxu0
    %v1147 = vadd.f32 %v962, %v1146
    %1148 = vmatmul.f32.gmra.mxu0 %v793
    %v1149 = vpop.f32.mrf.mxu0
    %v1150 = vadd.f32 %v965, %v1149
    %1151 = vmatmul.f32.gmra.mxu0 %v795
    %v1152 = vpop.f32.mrf.mxu0
    %v1153 = vadd.f32 %v968, %v1152
    %1154 = vmatmul.f32.gmra.mxu0 %v797
    %v1155 = vpop.f32.mrf.mxu0
    %v1156 = vadd.f32 %v971, %v1155
    %1157 = vmatmul.f32.gmra.mxu0 %v799
    %v1158 = vpop.f32.mrf.mxu0
    %v1159 = vadd.f32 %v974, %v1158
    %1160 = vmatmul.f32.gmra.mxu0 %v801
    %v1161 = vpop.f32.mrf.mxu0
    %v1162 = vadd.f32 %v977, %v1161
    %1163 = vmatmul.f32.gmra.mxu0 %v803
    %v1164 = vpop.f32.mrf.mxu0
    %v1165 = vadd.f32 %v980, %v1164
    %1166 = vmatmul.f32.gmra.mxu0 %v805
    %v1167 = vpop.f32.mrf.mxu0
    %v1168 = vadd.f32 %v983, %v1167
    %1169 = vmatmul.f32.gmra.mxu0 %v807
    %v1170 = vpop.f32.mrf.mxu0
    %v1171 = vadd.f32 %v986, %v1170
    %1172 = vmatmul.f32.gmra.mxu0 %v809
    %v1173 = vpop.f32.mrf.mxu0
    %v1174 = vadd.f32 %v989, %v1173
    %1175 = vmatmul.f32.gmra.mxu0 %v811
    %v1176 = vpop.f32.mrf.mxu0
    %v1177 = vadd.f32 %v992, %v1176
    %1178 = vmatmul.f32.gmra.mxu0 %v813
    %v1179 = vpop.f32.mrf.mxu0
    %v1180 = vadd.f32 %v995, %v1179
    %1181 = vmatmul.f32.gmra.mxu0 %v815
    %v1182 = vpop.f32.mrf.mxu0
    %v1183 = vadd.f32 %v998, %v1182
    %1184 = vmatmul.f32.gmra.mxu0 %v817
    %v1185 = vpop.f32.mrf.mxu0
    %v1186 = vadd.f32 %v1001, %v1185
    %1187 = vmatmul.f32.gmra.mxu0 %v819
    %v1188 = vpop.f32.mrf.mxu0
    %v1189 = vadd.f32 %v1004, %v1188
    %1190 = vmatmul.f32.gmra.mxu0 %v821
    %v1191 = vpop.f32.mrf.mxu0
    %v1192 = vadd.f32 %v1007, %v1191
    %1193 = vmatmul.f32.gmra.mxu0 %v823
    %v1194 = vpop.f32.mrf.mxu0
    %v1195 = vadd.f32 %v1010, %v1194
    %1196 = vmatmul.f32.gmra.mxu0 %v825
    %v1197 = vpop.f32.mrf.mxu0
    %v1198 = vadd.f32 %v1013, %v1197
    %1199 = vmatmul.f32.gmra.mxu0 %v827
    %v1200 = vpop.f32.mrf.mxu0
    %v1201 = vadd.f32 %v1016, %v1200
    %1202 = vmatmul.f32.gmra.mxu0 %v829
    %v1203 = vpop.f32.mrf.mxu0
    %v1204 = vadd.f32 %v1019, %v1203
    %1205 = vmatmul.f32.gmra.mxu0 %v831
    %v1206 = vpop.f32.mrf.mxu0
    %v1207 = vadd.f32 %v1022, %v1206
    %1208 = vmatmul.f32.gmra.mxu0 %v833
    %v1209 = vpop.f32.mrf.mxu0
    %v1210 = vadd.f32 %v1025, %v1209
    %1211 = vmatmul.f32.gmra.mxu0 %v835
    %v1212 = vpop.f32.mrf.mxu0
    %v1213 = vadd.f32 %v1028, %v1212
    %1214 = vmatmul.f32.gmra.mxu0 %v837
    %v1215 = vpop.f32.mrf.mxu0
    %v1216 = vadd.f32 %v1031, %v1215
    %1217 = vmatmul.f32.gmra.mxu0 %v839
    %v1218 = vpop.f32.mrf.mxu0
    %v1219 = vadd.f32 %v1034, %v1218
    %1220 = vmatmul.f32.gmra.mxu0 %v841
    %v1221 = vpop.f32.mrf.mxu0
    %v1222 = vadd.f32 %v1037, %v1221
    %1223 = vmatmul.f32.gmra.mxu0 %v843
    %v1224 = vpop.f32.mrf.mxu0
    %v1225 = vadd.f32 %v1040, %v1224
    %1226 = vmatmul.f32.gmra.mxu0 %v845
    %v1227 = vpop.f32.mrf.mxu0
    %v1228 = vadd.f32 %v1043, %v1227
    %1229 = vmatmul.f32.gmra.mxu0 %v847
    %v1230 = vpop.f32.mrf.mxu0
    %v1231 = vadd.f32 %v1046, %v1230
    %1232 = vmatmul.f32.gmra.mxu0 %v849
    %v1233 = vpop.f32.mrf.mxu0
    %v1234 = vadd.f32 %v1049, %v1233
    %1235 = vmatmul.f32.gmra.mxu0 %v851
    %v1236 = vpop.f32.mrf.mxu0
    %v1237 = vadd.f32 %v1052, %v1236
    %1238 = vmatmul.f32.gmra.mxu0 %v853
    %v1239 = vpop.f32.mrf.mxu0
    %v1240 = vadd.f32 %v1055, %v1239
    %1241 = vmatmul.f32.gmra.mxu0 %v855
    %v1242 = vpop.f32.mrf.mxu0
    %v1243 = vadd.f32 %v1058, %v1242
    %1244 = vmatmul.f32.gmra.mxu0 %v857
    %v1245 = vpop.f32.mrf.mxu0
    %v1246 = vadd.f32 %v1061, %v1245
    %1247 = vmatmul.f32.gmra.mxu0 %v859
    %v1248 = vpop.f32.mrf.mxu0
    %v1249 = vadd.f32 %v1064, %v1248
    %1250 = vmatmul.f32.gmra.mxu0 %v861
    %v1251 = vpop.f32.mrf.mxu0
    %v1252 = vadd.f32 %v1067, %v1251
    %1253 = vmatmul.f32.gmra.mxu0 %v863
    %v1254 = vpop.f32.mrf.mxu0
    %v1255 = vadd.f32 %v1070, %v1254
    %1256 = vmatmul.f32.gmra.mxu0 %v865
    %v1257 = vpop.f32.mrf.mxu0
    %v1258 = vadd.f32 %v1073, %v1257
    %1259 = vmatmul.f32.gmra.mxu0 %v867
    %v1260 = vpop.f32.mrf.mxu0
    %v1261 = vadd.f32 %v1076, %v1260
    %1262 = vmatmul.f32.gmra.mxu0 %v869
    %v1263 = vpop.f32.mrf.mxu0
    %v1264 = vadd.f32 %v1079, %v1263
    %1265 = vmatmul.f32.gmra.mxu0 %v871
    %v1266 = vpop.f32.mrf.mxu0
    %v1267 = vadd.f32 %v1082, %v1266
    %1268 = vmatmul.f32.gmra.mxu0 %v873
    %v1269 = vpop.f32.mrf.mxu0
    %v1270 = vadd.f32 %v1085, %v1269
    %1271 = vmatmul.f32.gmra.mxu0 %v875
    %v1272 = vpop.f32.mrf.mxu0
    %v1273 = vadd.f32 %v1088, %v1272
    %1274 = vmatmul.f32.gmra.mxu0 %v877
    %v1275 = vpop.f32.mrf.mxu0
    %v1276 = vadd.f32 %v1091, %v1275
    %1277 = vmatmul.f32.gmra.mxu0 %v879
    %v1278 = vpop.f32.mrf.mxu0
    %v1279 = vadd.f32 %v1094, %v1278
    %1280 = vmatmul.f32.gmra.mxu0 %v881
    %v1281 = vpop.f32.mrf.mxu0
    %v1282 = vadd.f32 %v1097, %v1281
    %1283 = vdwg.mxu0
    %v1284 = vld [vmem:[%s4] sm:$0xff]
    %v1285 = vld [vmem:[%s4 + $0x8] sm:$0xff]
    %v1286 = vld [vmem:[%s4 + $0x10] sm:$0xff]
    %v1287 = vld [vmem:[%s4 + $0x18] sm:$0xff]
    %v1288 = vld [vmem:[%s5] sm:$0xff]
    %1290 = vset.pattern.permute.xlu0 0
    %1291 = vperm.xlu0 %1290, %v1288
    %v1292 = vpop.permute.xlu0 %1291
    %v1295 = vsel %vm69, %v1287, 0
    %1297 = vmatpush.msra.mxu0 %v1162
    %1298 = vmatpush.msra.mxu0 %v1159
    %1299 = vmatpush.msra.mxu0 %v1156
    %1300 = vmatpush.msra.mxu0 %v1153
    %1301 = vmatpush.msra.mxu0 %v1150
    %1302 = vmatpush.msra.mxu0 %v1147
    %1303 = vmatpush.msra.mxu0 %v1144
    %1304 = vmatpush.msra.mxu0 %v1141
    %1305 = vmatpush.msra.mxu0 %v1138
    %1306 = vmatpush.msra.mxu0 %v1135
    %1307 = vmatpush.msra.mxu0 %v1132
    %1308 = vmatpush.msra.mxu0 %v1129
    %1309 = vmatpush.msra.mxu0 %v1126
    %1310 = vmatpush.msra.mxu0 %v1123
    %1311 = vmatpush.msra.mxu0 %v1120
    %1312 = vmatpush.msra.mxu0 %v1117
    %1313 = vmatmul.f32.gmra.mxu0 %v1284
    %v1314 = vpop.f32.mrf.mxu0
    %v1315 = vadd.f32 %v1292, %v1314
    %1316 = vdwg.mxu0
    %1317 = vmatpush.msra.mxu0 %v1210
    %1318 = vmatpush.msra.mxu0 %v1207
    %1319 = vmatpush.msra.mxu0 %v1204
    %1320 = vmatpush.msra.mxu0 %v1201
    %1321 = vmatpush.msra.mxu0 %v1198
    %1322 = vmatpush.msra.mxu0 %v1195
    %1323 = vmatpush.msra.mxu0 %v1192
    %1324 = vmatpush.msra.mxu0 %v1189
    %1325 = vmatpush.msra.mxu0 %v1186
    %1326 = vmatpush.msra.mxu0 %v1183
    %1327 = vmatpush.msra.mxu0 %v1180
    %1328 = vmatpush.msra.mxu0 %v1177
    %1329 = vmatpush.msra.mxu0 %v1174
    %1330 = vmatpush.msra.mxu0 %v1171
    %1331 = vmatpush.msra.mxu0 %v1168
    %1332 = vmatpush.msra.mxu0 %v1165
    %1333 = vmatmul.f32.gmra.mxu0 %v1285
    %v1334 = vpop.f32.mrf.mxu0
    %v1335 = vadd.f32 %v1315, %v1334
    %1336 = vdwg.mxu0
    %1337 = vmatpush.msra.mxu0 %v1258
    %1338 = vmatpush.msra.mxu0 %v1255
    %1339 = vmatpush.msra.mxu0 %v1252
    %1340 = vmatpush.msra.mxu0 %v1249
    %1341 = vmatpush.msra.mxu0 %v1246
    %1342 = vmatpush.msra.mxu0 %v1243
    %1343 = vmatpush.msra.mxu0 %v1240
    %1344 = vmatpush.msra.mxu0 %v1237
    %1345 = vmatpush.msra.mxu0 %v1234
    %1346 = vmatpush.msra.mxu0 %v1231
    %1347 = vmatpush.msra.mxu0 %v1228
    %1348 = vmatpush.msra.mxu0 %v1225
    %1349 = vmatpush.msra.mxu0 %v1222
    %1350 = vmatpush.msra.mxu0 %v1219
    %1351 = vmatpush.msra.mxu0 %v1216
    %1352 = vmatpush.msra.mxu0 %v1213
    %1353 = vmatmul.f32.gmra.mxu0 %v1286
    %v1354 = vpop.f32.mrf.mxu0
    %v1355 = vadd.f32 %v1335, %v1354
    %1356 = vdwg.mxu0
    %1357 = vmatpush.msra.mxu0 0.0
    %1358 = vmatpush.msra.mxu0 0.0
    %1359 = vmatpush.msra.mxu0 0.0
    %1360 = vmatpush.msra.mxu0 0.0
    %1361 = vmatpush.msra.mxu0 0.0
    %1362 = vmatpush.msra.mxu0 0.0
    %1363 = vmatpush.msra.mxu0 0.0
    %1364 = vmatpush.msra.mxu0 0.0
    %1365 = vmatpush.msra.mxu0 %v1282
    %1366 = vmatpush.msra.mxu0 %v1279
    %1367 = vmatpush.msra.mxu0 %v1276
    %1368 = vmatpush.msra.mxu0 %v1273
    %1369 = vmatpush.msra.mxu0 %v1270
    %1370 = vmatpush.msra.mxu0 %v1267
    %1371 = vmatpush.msra.mxu0 %v1264
    %1372 = vmatpush.msra.mxu0 %v1261
    %1373 = vmatmul.f32.gmra.mxu0 %v1295
    %v1374 = vpop.f32.mrf.mxu0
    %v1375 = vadd.f32 %v1355, %v1374
    %1376 = vdwg.mxu0
    %v1377 = vtanh.pop %v1375
    %v1378 = vld [vmem:[%s6] sm:$0x3]
    %v1379 = vld [vmem:[%s7] sm:$0x3]
    %1381 = vset.pattern.permute.xlu0 0
    %1382 = vperm.xlu0 %1381, %v1379
    %v1383 = vpop.permute.xlu0 %1382
    %vm1385 = vcmask 64512
    %v1387 = vsel %vm1385, %v1378, 0
    %1389 = vmatpush.msra.mxu0 0.0
    %1390 = vmatpush.msra.mxu0 0.0
    %1391 = vmatpush.msra.mxu0 0.0
    %1392 = vmatpush.msra.mxu0 0.0
    %1393 = vmatpush.msra.mxu0 0.0
    %1394 = vmatpush.msra.mxu0 0.0
    %1395 = vmatpush.msra.mxu0 0.0
    %1396 = vmatpush.msra.mxu0 0.0
    %1397 = vmatpush.msra.mxu0 0.0
    %1398 = vmatpush.msra.mxu0 0.0
    %1399 = vmatpush.msra.mxu0 0.0
    %1400 = vmatpush.msra.mxu0 0.0
    %1401 = vmatpush.msra.mxu0 0.0
    %1402 = vmatpush.msra.mxu0 0.0
    %1403 = vmatpush.msra.mxu0 0.0
    %1404 = vmatpush.msra.mxu0 %v1377
    %1405 = vmatmul.f32.gmra.mxu0 %v1387
    %v1406 = vpop.f32.mrf.mxu0
    %v1407 = vadd.f32 %v1383, %v1406
    %1408 = vdwg.mxu0
    %vm1409 = vcmask 9216
    %v1410 = vsel %vm1409, %v1407, -inf
    %v1411 = vrot.slane %v1410, 4
    %v1412 = vmax.f32 %v1410, %v1411
    %v1413 = vrot.slane %v1412, 2
    %v1414 = vmax.f32 %v1412, %v1413
    %v1415 = vrot.slane %v1414, 1
    %v1416 = vmax.f32 %v1414, %v1415
    %v1417 = vsub.f32 %v1407, %v1416
    %v1418 = vmul.f32 %v1417, 1.442695
    %v1419 = vpow.pop %v1418
    %v1420 = vsel %vm1409, %v1419, 0.0
    %v1421 = vrot.slane %v1420, 4
    %v1422 = vadd.f32 %v1420, %v1421
    %v1423 = vrot.slane %v1422, 2
    %v1424 = vadd.f32 %v1422, %v1423
    %v1425 = vrot.slane %v1424, 1
    %v1426 = vadd.f32 %v1424, %v1425
    %v1427 = vrcp.pop %v1426
    %v1428 = vmul.f32 %v1426, %v1427
    %v1429 = vsub.f32 1.0, %v1428
    %v1430 = vmul.f32 %v1427, %v1429
    %v1431 = vadd.f32 %v1427, %v1430
    %vm1432 = vweird.f32 %v1426
    %vm1433 = vweird.f32 %v1427
    %vm1434 = vmor %vm1432, %vm1433
    %v1435 = vsel %vm1434, %v1427, %v1431
    %v1436 = vand.u32 2147483647, %v1426
    %vm1437 = vcmp.eq.f32.partialorder %v1436, 8.507059e+37
    %v1438 = vand.u32 %v1426, 2147483648
    %v1439 = vor.u32 1.1754944e-38, %v1438
    %v1440 = vsel %vm1437, %v1439, %v1435
    %v1441 = vmul.f32 %v1419, %v1440
    %1442 = vst.msk [vmem:[%s8] sm:$0x3] %vm1409, %v1441
    // Predicated region
    $region38: #{chebnet_forward.3} parent=1 // pred_check
      _
    $region39: #{chebnet_forward.3} parent=1 // pred_check_branch
      %1444 = sbr.rel (0) target = $region41
    $region40: #{chebnet_forward.3} parent=1 // pred_region
      _
    $region41: #{chebnet_forward.3} parent=1 // pred_fallthru
      _
    // Predicated region
    $region42: #{chebnet_forward.3} parent=1 // pred_check
      _
    $region43: #{chebnet_forward.3} parent=1 // pred_check_branch
      %1446 = sbr.rel (0) target = $region45
    $region44: #{chebnet_forward.3} parent=1 // pred_region
      _
    $region45: #{chebnet_forward.3} parent=1 // pred_fallthru
      _
    %1447 = vsyncpa [#allocation3], 1

// kernel: chebnet_forward.2
$region0: #{chebnet_forward.2}
  #allocation0 [shape = 'u32[]', space=smem, size = 0x4, offset = 0x4, fixed_abs, tag = 'smem constant byte address 0x4 - core index']
  #allocation1 [shape = 'u32[72,128]{1,0:T(1,128)}', space=vmem, size = 0x9000, scoped, tag = 'internal scratch']
  %s0 = inlined_call_operand.vmem [shape: f32[128,128], index: 0, kind: input, shape index: {}]
  %s1 = inlined_call_operand.hbm [shape: f32[128,128], index: 1, kind: input, shape index: {}]
  %s2 = inlined_call_operand.vmem [shape: f32[1,128], index: 2, kind: input, shape index: {}]
  %s3 = inlined_call_operand.hbm [shape: f32[128,128], index: 3, kind: input, shape index: {}]
  %s4 = inlined_call_operand.hbm [shape: f32[128,128], index: 4, kind: input, shape index: {}]
  %s5 = inlined_call_operand.vmem [shape: f32[64,128], index: 5, kind: input, shape index: {}]
  %s6 = inlined_call_operand.vmem [shape: f32[128,64], index: 6, kind: input, shape index: {}]
  %s7 = inlined_call_operand.vmem [shape: f32[64,256], index: 7, kind: output, shape index: {0}]
  %s8 = inlined_call_operand.vmem [shape: f32[64,128], index: 8, kind: output, shape index: {1}]
  %9 = xla_tuple %s7, %s8
  %s10 = sld [smem:[#allocation0]]
  $region58: #{chebnet_forward.2} parent=0
    _
  %s12 = ssub.s32 1, %s10
  %s13 = scalar_select 0, %s12, %s10
  $region1: #{chebnet_forward.2} parent=0
    #allocation2 [shape = 'u8[65536]{0}', space=vmem, size = 0x10000, scoped, tag = 'input window, operand 1, single buffered']
    #allocation3 [shape = 's32[1]{0}', space=sflag, size = 0x4, scoped, tag = 'scoped memory for chebnet_forward.2']
    #allocation4 [shape = 'u8[65536]{0}', space=vmem, size = 0x10000, scoped, tag = 'input window, operand 3, single buffered']
    #allocation5 [shape = 's32[1]{0}', space=sflag, size = 0x4, scoped, tag = 'scoped memory for chebnet_forward.2']
    #allocation6 [shape = 'u8[65536]{0}', space=vmem, size = 0x10000, scoped, tag = 'input window, operand 4, single buffered']
    %14 = vsyncpa [#allocation3], 0
    %15 = vsyncpa [#allocation5], 0
    // Predicated region
    $region2: #{chebnet_forward.2} parent=1 // pred_check
      _
    $region3: #{chebnet_forward.2} parent=1 // pred_check_branch
      %17 = sbr.rel (0) target = $region5
    $region4: #{chebnet_forward.2} parent=1 // pred_region
      _
    $region5: #{chebnet_forward.2} parent=1 // pred_fallthru
      _
    // Predicated region
    $region6: #{chebnet_forward.2} parent=1 // pred_check
      _
    $region7: #{chebnet_forward.2} parent=1 // pred_check_branch
      %19 = sbr.rel (0) target = $region9
    $region8: #{chebnet_forward.2} parent=1 // pred_region
      %21 = vsyncadd [#allocation3], 0
      %s22 = sshll.u32 %s1, 4
      %s23 = int_to_ptr.hbm [resolvable:$true] %s22
      %s24 = sshll.u32 [#allocation2], 4
      %s25 = int_to_ptr.vmem [resolvable:$true] %s24
      %30 = dma.hbm_to_vmem [thread:$0]  %s23, 2048, %s25, [#allocation3], 128, 128, 8
    $region9: #{chebnet_forward.2} parent=1 // pred_fallthru
      _
    // Predicated region
    $region10: #{chebnet_forward.2} parent=1 // pred_check
      _
    $region11: #{chebnet_forward.2} parent=1 // pred_check_branch
      %32 = sbr.rel (0) target = $region13
    $region12: #{chebnet_forward.2} parent=1 // pred_region
      _
    $region13: #{chebnet_forward.2} parent=1 // pred_fallthru
      _
    // Predicated region
    $region14: #{chebnet_forward.2} parent=1 // pred_check
      _
    $region15: #{chebnet_forward.2} parent=1 // pred_check_branch
      %34 = sbr.rel (0) target = $region17
    $region16: #{chebnet_forward.2} parent=1 // pred_region
      %36 = vsyncadd [#allocation5], 0
      %s37 = sshll.u32 %s3, 4
      %s38 = int_to_ptr.hbm [resolvable:$true] %s37
      %s39 = sshll.u32 [#allocation4], 4
      %s40 = int_to_ptr.vmem [resolvable:$true] %s39
      %45 = dma.hbm_to_vmem [thread:$0]  %s38, 2048, %s40, [#allocation5], 128, 128, 8
    $region17: #{chebnet_forward.2} parent=1 // pred_fallthru
      _
    // Predicated region
    $region18: #{chebnet_forward.2} parent=1 // pred_check
      _
    $region19: #{chebnet_forward.2} parent=1 // pred_check_branch
      %47 = sbr.rel (0) target = $region21
    $region20: #{chebnet_forward.2} parent=1 // pred_region
      %49 = vsyncadd [#allocation5], 0
      %s50 = sshll.u32 %s4, 4
      %s51 = int_to_ptr.hbm [resolvable:$true] %s50
      %s52 = sshll.u32 [#allocation6], 4
      %s53 = int_to_ptr.vmem [resolvable:$true] %s52
      %58 = dma.hbm_to_vmem [thread:$0]  %s51, 2048, %s53, [#allocation5], 128, 128, 8
    $region21: #{chebnet_forward.2} parent=1 // pred_fallthru
      _
    // Predicated region
    $region22: #{chebnet_forward.2} parent=1 // pred_check
      _
    $region23: #{chebnet_forward.2} parent=1 // pred_check_branch
      %60 = sbr.rel (0) target = $region25
    $region24: #{chebnet_forward.2} parent=1 // pred_region
      _
    $region25: #{chebnet_forward.2} parent=1 // pred_fallthru
      _
    // Predicated region
    $region26: #{chebnet_forward.2} parent=1 // pred_check
      _
    $region27: #{chebnet_forward.2} parent=1 // pred_check_branch
      %62 = sbr.rel (0) target = $region29
    $region28: #{chebnet_forward.2} parent=1 // pred_region
      _
    $region29: #{chebnet_forward.2} parent=1 // pred_fallthru
      _
    // Predicated region
    $region30: #{chebnet_forward.2} parent=1 // pred_check
      _
    $region31: #{chebnet_forward.2} parent=1 // pred_check_branch
      %64 = sbr.rel (0) target = $region33
    $region32: #{chebnet_forward.2} parent=1 // pred_region
      %66 = dma.done [#allocation3], 2048
    $region33: #{chebnet_forward.2} parent=1 // pred_fallthru
      _
    // Predicated region
    $region34: #{chebnet_forward.2} parent=1 // pred_check
      _
    $region35: #{chebnet_forward.2} parent=1 // pred_check_branch
      %68 = sbr.rel (0) target = $region37
    $region36: #{chebnet_forward.2} parent=1 // pred_region
      %70 = dma.done [#allocation5], 2048
    $region37: #{chebnet_forward.2} parent=1 // pred_fallthru
      _
    // Predicated region
    $region38: #{chebnet_forward.2} parent=1 // pred_check
      _
    $region39: #{chebnet_forward.2} parent=1 // pred_check_branch
      %72 = sbr.rel (0) target = $region41
    $region40: #{chebnet_forward.2} parent=1 // pred_region
      %74 = dma.done [#allocation5], 2048
    $region41: #{chebnet_forward.2} parent=1 // pred_fallthru
      _
    %v75 = vld [vmem:[%s0] sm:$0xff]
    %v76 = vld [vmem:[%s0 + $0x8] sm:$0xff]
    %v77 = vld [vmem:[%s0 + $0x10] sm:$0xff]
    %v78 = vld [vmem:[%s0 + $0x18] sm:$0xff]
    %v79 = vld [vmem:[%s0 + $0x20] sm:$0xff]
    %v80 = vld [vmem:[%s0 + $0x28] sm:$0xff]
    %v81 = vld [vmem:[%s0 + $0x30] sm:$0xff]
    %v82 = vld [vmem:[%s0 + $0x38] sm:$0xff]
    %v83 = vld [vmem:[%s0 + $0x40] sm:$0xff]
    %v84 = vld [vmem:[%s0 + $0x48] sm:$0xff]
    %v85 = vld [vmem:[%s0 + $0x50] sm:$0xff]
    %v86 = vld [vmem:[%s0 + $0x58] sm:$0xff]
    %v87 = vld [vmem:[%s0 + $0x60] sm:$0xff]
    %v88 = vld [vmem:[%s0 + $0x68] sm:$0xff]
    %v89 = vld [vmem:[%s0 + $0x70] sm:$0xff]
    %v90 = vld [vmem:[%s0 + $0x78] sm:$0xff]
    %v91 = vld [vmem:[#allocation2] sm:$0xff]
    %v92 = vld [vmem:[#allocation2 + $0x8] sm:$0xff]
    %v93 = vld [vmem:[#allocation2 + $0x10] sm:$0xff]
    %v94 = vld [vmem:[#allocation2 + $0x18] sm:$0xff]
    %v95 = vld [vmem:[#allocation2 + $0x20] sm:$0xff]
    %v96 = vld [vmem:[#allocation2 + $0x28] sm:$0xff]
    %v97 = vld [vmem:[#allocation2 + $0x30] sm:$0xff]
    %v98 = vld [vmem:[#allocation2 + $0x38] sm:$0xff]
    %v99 = vld [vmem:[#allocation2 + $0x40] sm:$0xff]
    %v100 = vld [vmem:[#allocation2 + $0x48] sm:$0xff]
    %v101 = vld [vmem:[#allocation2 + $0x50] sm:$0xff]
    %v102 = vld [vmem:[#allocation2 + $0x58] sm:$0xff]
    %v103 = vld [vmem:[#allocation2 + $0x60] sm:$0xff]
    %v104 = vld [vmem:[#allocation2 + $0x68] sm:$0xff]
    %v105 = vld [vmem:[#allocation2 + $0x70] sm:$0xff]
    %v106 = vld [vmem:[#allocation2 + $0x78] sm:$0xff]
    %v107 = vld [vmem:[%s2] sm:$0x1]
    %v109 = vperm.slane %v107, 0
    %111 = vmatpush.msra.mxu0 %v106
    %112 = vmatpush.msra.mxu0 %v105
    %113 = vmatpush.msra.mxu0 %v104
    %114 = vmatpush.msra.mxu0 %v103
    %115 = vmatpush.msra.mxu0 %v102
    %116 = vmatpush.msra.mxu0 %v101
    %117 = vmatpush.msra.mxu0 %v100
    %118 = vmatpush.msra.mxu0 %v99
    %119 = vmatpush.msra.mxu0 %v98
    %120 = vmatpush.msra.mxu0 %v97
    %121 = vmatpush.msra.mxu0 %v96
    %122 = vmatpush.msra.mxu0 %v95
    %123 = vmatpush.msra.mxu0 %v94
    %124 = vmatpush.msra.mxu0 %v93
    %125 = vmatpush.msra.mxu0 %v92
    %126 = vmatpush.msra.mxu0 %v91
    %127 = vmatmul.f32.gmra.mxu0 %v75
    %v128 = vpop.f32.mrf.mxu0
    %v129 = vadd.f32 %v109, %v128
    %130 = vmatmul.f32.gmra.mxu0 %v76
    %v131 = vpop.f32.mrf.mxu0
    %v132 = vadd.f32 %v109, %v131
    %133 = vmatmul.f32.gmra.mxu0 %v77
    %v134 = vpop.f32.mrf.mxu0
    %v135 = vadd.f32 %v109, %v134
    %136 = vmatmul.f32.gmra.mxu0 %v78
    %v137 = vpop.f32.mrf.mxu0
    %v138 = vadd.f32 %v109, %v137
    %139 = vmatmul.f32.gmra.mxu0 %v79
    %v140 = vpop.f32.mrf.mxu0
    %v141 = vadd.f32 %v109, %v140
    %142 = vmatmul.f32.gmra.mxu0 %v80
    %v143 = vpop.f32.mrf.mxu0
    %v144 = vadd.f32 %v109, %v143
    %145 = vmatmul.f32.gmra.mxu0 %v81
    %v146 = vpop.f32.mrf.mxu0
    %v147 = vadd.f32 %v109, %v146
    %148 = vmatmul.f32.gmra.mxu0 %v82
    %v149 = vpop.f32.mrf.mxu0
    %v150 = vadd.f32 %v109, %v149
    %151 = vmatmul.f32.gmra.mxu0 %v83
    %v152 = vpop.f32.mrf.mxu0
    %v153 = vadd.f32 %v109, %v152
    %154 = vmatmul.f32.gmra.mxu0 %v84
    %v155 = vpop.f32.mrf.mxu0
    %v156 = vadd.f32 %v109, %v155
    %157 = vmatmul.f32.gmra.mxu0 %v85
    %v158 = vpop.f32.mrf.mxu0
    %v159 = vadd.f32 %v109, %v158
    %160 = vmatmul.f32.gmra.mxu0 %v86
    %v161 = vpop.f32.mrf.mxu0
    %v162 = vadd.f32 %v109, %v161
    %163 = vmatmul.f32.gmra.mxu0 %v87
    %v164 = vpop.f32.mrf.mxu0
    %v165 = vadd.f32 %v109, %v164
    %166 = vmatmul.f32.gmra.mxu0 %v88
    %v167 = vpop.f32.mrf.mxu0
    %v168 = vadd.f32 %v109, %v167
    %169 = vmatmul.f32.gmra.mxu0 %v89
    %v170 = vpop.f32.mrf.mxu0
    %v171 = vadd.f32 %v109, %v170
    %172 = vmatmul.f32.gmra.mxu0 %v90
    %v173 = vpop.f32.mrf.mxu0
    %v174 = vadd.f32 %v109, %v173
    %175 = vdwg.mxu0
    %176 = vst [vmem:[%s7] sm:$0xff] %v129
    %177 = vst [vmem:[%s7 + $0x10] sm:$0xff] %v132
    %178 = vst [vmem:[%s7 + $0x20] sm:$0xff] %v135
    %179 = vst [vmem:[%s7 + $0x30] sm:$0xff] %v138
    %180 = vst [vmem:[%s7 + $0x40] sm:$0xff] %v141
    %181 = vst [vmem:[%s7 + $0x50] sm:$0xff] %v144
    %182 = vst [vmem:[%s7 + $0x60] sm:$0xff] %v147
    %183 = vst [vmem:[%s7 + $0x70] sm:$0xff] %v150
    %184 = vst [vmem:[%s7 + $0x8] sm:$0xff] %v153
    %185 = vst [vmem:[%s7 + $0x18] sm:$0xff] %v156
    %186 = vst [vmem:[%s7 + $0x28] sm:$0xff] %v159
    %187 = vst [vmem:[%s7 + $0x38] sm:$0xff] %v162
    %188 = vst [vmem:[%s7 + $0x48] sm:$0xff] %v165
    %189 = vst [vmem:[%s7 + $0x58] sm:$0xff] %v168
    %190 = vst [vmem:[%s7 + $0x68] sm:$0xff] %v171
    %191 = vst [vmem:[%s7 + $0x78] sm:$0xff] %v174
    %v192 = vld [vmem:[#allocation4] sm:$0xff]
    %v193 = vld [vmem:[#allocation4 + $0x8] sm:$0xff]
    %v194 = vld [vmem:[#allocation4 + $0x10] sm:$0xff]
    %v195 = vld [vmem:[#allocation4 + $0x18] sm:$0xff]
    %v196 = vld [vmem:[#allocation4 + $0x20] sm:$0xff]
    %v197 = vld [vmem:[#allocation4 + $0x28] sm:$0xff]
    %v198 = vld [vmem:[#allocation4 + $0x30] sm:$0xff]
    %v199 = vld [vmem:[#allocation4 + $0x38] sm:$0xff]
    %v200 = vld [vmem:[#allocation4 + $0x40] sm:$0xff]
    %v201 = vld [vmem:[#allocation4 + $0x48] sm:$0xff]
    %v202 = vld [vmem:[#allocation4 + $0x50] sm:$0xff]
    %v203 = vld [vmem:[#allocation4 + $0x58] sm:$0xff]
    %v204 = vld [vmem:[#allocation4 + $0x60] sm:$0xff]
    %v205 = vld [vmem:[#allocation4 + $0x68] sm:$0xff]
    %v206 = vld [vmem:[#allocation4 + $0x70] sm:$0xff]
    %v207 = vld [vmem:[#allocation4 + $0x78] sm:$0xff]
    %208 = vmatpush.msra.mxu0 %v207
    %209 = vmatpush.msra.mxu0 %v206
    %210 = vmatpush.msra.mxu0 %v205
    %211 = vmatpush.msra.mxu0 %v204
    %212 = vmatpush.msra.mxu0 %v203
    %213 = vmatpush.msra.mxu0 %v202
    %214 = vmatpush.msra.mxu0 %v201
    %215 = vmatpush.msra.mxu0 %v200
    %216 = vmatpush.msra.mxu0 %v199
    %217 = vmatpush.msra.mxu0 %v198
    %218 = vmatpush.msra.mxu0 %v197
    %219 = vmatpush.msra.mxu0 %v196
    %220 = vmatpush.msra.mxu0 %v195
    %221 = vmatpush.msra.mxu0 %v194
    %222 = vmatpush.msra.mxu0 %v193
    %223 = vmatpush.msra.mxu0 %v192
    %224 = vmatmul.f32.gmra.mxu0 %v129
    %v225 = vpop.f32.mrf.mxu0
    %v226 = vadd.f32 0.0, %v225
    %227 = vmatmul.f32.gmra.mxu0 %v132
    %v228 = vpop.f32.mrf.mxu0
    %v229 = vadd.f32 0.0, %v228
    %230 = vmatmul.f32.gmra.mxu0 %v135
    %v231 = vpop.f32.mrf.mxu0
    %v232 = vadd.f32 0.0, %v231
    %233 = vmatmul.f32.gmra.mxu0 %v138
    %v234 = vpop.f32.mrf.mxu0
    %v235 = vadd.f32 0.0, %v234
    %236 = vmatmul.f32.gmra.mxu0 %v141
    %v237 = vpop.f32.mrf.mxu0
    %v238 = vadd.f32 0.0, %v237
    %239 = vmatmul.f32.gmra.mxu0 %v144
    %v240 = vpop.f32.mrf.mxu0
    %v241 = vadd.f32 0.0, %v240
    %242 = vmatmul.f32.gmra.mxu0 %v147
    %v243 = vpop.f32.mrf.mxu0
    %v244 = vadd.f32 0.0, %v243
    %245 = vmatmul.f32.gmra.mxu0 %v150
    %v246 = vpop.f32.mrf.mxu0
    %v247 = vadd.f32 0.0, %v246
    %248 = vmatmul.f32.gmra.mxu0 %v153
    %v249 = vpop.f32.mrf.mxu0
    %v250 = vadd.f32 0.0, %v249
    %251 = vmatmul.f32.gmra.mxu0 %v156
    %v252 = vpop.f32.mrf.mxu0
    %v253 = vadd.f32 0.0, %v252
    %254 = vmatmul.f32.gmra.mxu0 %v159
    %v255 = vpop.f32.mrf.mxu0
    %v256 = vadd.f32 0.0, %v255
    %257 = vmatmul.f32.gmra.mxu0 %v162
    %v258 = vpop.f32.mrf.mxu0
    %v259 = vadd.f32 0.0, %v258
    %260 = vmatmul.f32.gmra.mxu0 %v165
    %v261 = vpop.f32.mrf.mxu0
    %v262 = vadd.f32 0.0, %v261
    %263 = vmatmul.f32.gmra.mxu0 %v168
    %v264 = vpop.f32.mrf.mxu0
    %v265 = vadd.f32 0.0, %v264
    %266 = vmatmul.f32.gmra.mxu0 %v171
    %v267 = vpop.f32.mrf.mxu0
    %v268 = vadd.f32 0.0, %v267
    %269 = vmatmul.f32.gmra.mxu0 %v174
    %v270 = vpop.f32.mrf.mxu0
    %v271 = vadd.f32 0.0, %v270
    %272 = vdwg.mxu0
    %274 = vset.pattern.permute.xlu0 1
    %275 = vperm.xlu0 %274, %v226
    %v276 = vpop.permute.xlu0 %275
    %279 = vset.pattern.permute.xlu0 1
    %280 = vperm.xlu0 %279, %v229
    %v281 = vpop.permute.xlu0 %280
    %284 = vset.pattern.permute.xlu0 1
    %285 = vperm.xlu0 %284, %v232
    %v286 = vpop.permute.xlu0 %285
    %289 = vset.pattern.permute.xlu0 1
    %290 = vperm.xlu0 %289, %v235
    %v291 = vpop.permute.xlu0 %290
    %294 = vset.pattern.permute.xlu0 1
    %295 = vperm.xlu0 %294, %v238
    %v296 = vpop.permute.xlu0 %295
    %299 = vset.pattern.permute.xlu0 1
    %300 = vperm.xlu0 %299, %v241
    %v301 = vpop.permute.xlu0 %300
    %304 = vset.pattern.permute.xlu0 1
    %305 = vperm.xlu0 %304, %v244
    %v306 = vpop.permute.xlu0 %305
    %309 = vset.pattern.permute.xlu0 1
    %310 = vperm.xlu0 %309, %v247
    %v311 = vpop.permute.xlu0 %310
    %314 = vset.pattern.permute.xlu0 1
    %315 = vperm.xlu0 %314, %v250
    %v316 = vpop.permute.xlu0 %315
    %319 = vset.pattern.permute.xlu0 1
    %320 = vperm.xlu0 %319, %v253
    %v321 = vpop.permute.xlu0 %320
    %324 = vset.pattern.permute.xlu0 1
    %325 = vperm.xlu0 %324, %v256
    %v326 = vpop.permute.xlu0 %325
    %329 = vset.pattern.permute.xlu0 1
    %330 = vperm.xlu0 %329, %v259
    %v331 = vpop.permute.xlu0 %330
    %334 = vset.pattern.permute.xlu0 1
    %335 = vperm.xlu0 %334, %v262
    %v336 = vpop.permute.xlu0 %335
    %339 = vset.pattern.permute.xlu0 1
    %340 = vperm.xlu0 %339, %v265
    %v341 = vpop.permute.xlu0 %340
    %344 = vset.pattern.permute.xlu0 1
    %345 = vperm.xlu0 %344, %v268
    %v346 = vpop.permute.xlu0 %345
    %349 = vset.pattern.permute.xlu0 1
    %350 = vperm.xlu0 %349, %v271
    %v351 = vpop.permute.xlu0 %350
    %353 = vset.pattern.permute.xlu0 0
    %354 = vperm.xlu0 %353, %v226
    %v355 = vpop.permute.xlu0 %354
    %356 = vset.pattern.permute.xlu0 0
    %357 = vperm.xlu0 %356, %v229
    %v358 = vpop.permute.xlu0 %357
    %359 = vset.pattern.permute.xlu0 0
    %360 = vperm.xlu0 %359, %v232
    %v361 = vpop.permute.xlu0 %360
    %362 = vset.pattern.permute.xlu0 0
    %363 = vperm.xlu0 %362, %v235
    %v364 = vpop.permute.xlu0 %363
    %365 = vset.pattern.permute.xlu0 0
    %366 = vperm.xlu0 %365, %v238
    %v367 = vpop.permute.xlu0 %366
    %368 = vset.pattern.permute.xlu0 0
    %369 = vperm.xlu0 %368, %v241
    %v370 = vpop.permute.xlu0 %369
    %371 = vset.pattern.permute.xlu0 0
    %372 = vperm.xlu0 %371, %v244
    %v373 = vpop.permute.xlu0 %372
    %374 = vset.pattern.permute.xlu0 0
    %375 = vperm.xlu0 %374, %v247
    %v376 = vpop.permute.xlu0 %375
    %377 = vset.pattern.permute.xlu0 0
    %378 = vperm.xlu0 %377, %v250
    %v379 = vpop.permute.xlu0 %378
    %380 = vset.pattern.permute.xlu0 0
    %381 = vperm.xlu0 %380, %v253
    %v382 = vpop.permute.xlu0 %381
    %383 = vset.pattern.permute.xlu0 0
    %384 = vperm.xlu0 %383, %v256
    %v385 = vpop.permute.xlu0 %384
    %386 = vset.pattern.permute.xlu0 0
    %387 = vperm.xlu0 %386, %v259
    %v388 = vpop.permute.xlu0 %387
    %389 = vset.pattern.permute.xlu0 0
    %390 = vperm.xlu0 %389, %v262
    %v391 = vpop.permute.xlu0 %390
    %392 = vset.pattern.permute.xlu0 0
    %393 = vperm.xlu0 %392, %v265
    %v394 = vpop.permute.xlu0 %393
    %395 = vset.pattern.permute.xlu0 0
    %396 = vperm.xlu0 %395, %v268
    %v397 = vpop.permute.xlu0 %396
    %398 = vset.pattern.permute.xlu0 0
    %399 = vperm.xlu0 %398, %v271
    %v400 = vpop.permute.xlu0 %399
    %v401 = vlaneseq
    %v402 = vand.u32 %v401, 127
    %v403 = vperm.slane %v355, %v402
    %v404 = vadd.s32 %v402, 4294967288
    %v405 = vperm.slane %v358, %v404
    %vm406 = vcmask 130112
    %v407 = vsel %vm406, %v405, %v403
    %v408 = vadd.s32 %v402, 4294967280
    %v409 = vperm.slane %v361, %v408
    %vm410 = vcmask 195712
    %v411 = vsel %vm410, %v409, %v407
    %v412 = vadd.s32 %v402, 4294967272
    %v413 = vperm.slane %v364, %v412
    %vm414 = vcmask 261312
    %v415 = vsel %vm414, %v413, %v411
    %v416 = vadd.s32 %v402, 4294967264
    %v417 = vperm.slane %v367, %v416
    %vm418 = vcmask 326912
    %v419 = vsel %vm418, %v417, %v415
    %v420 = vadd.s32 %v402, 4294967256
    %v421 = vperm.slane %v370, %v420
    %vm422 = vcmask 392512
    %v423 = vsel %vm422, %v421, %v419
    %v424 = vadd.s32 %v402, 4294967248
    %v425 = vperm.slane %v373, %v424
    %vm426 = vcmask 458112
    %v427 = vsel %vm426, %v425, %v423
    %v428 = vadd.s32 %v402, 4294967240
    %v429 = vperm.slane %v376, %v428
    %vm430 = vcmask 523712
    %v431 = vsel %vm430, %v429, %v427
    %v432 = vadd.s32 %v402, 4294967232
    %v433 = vperm.slane %v379, %v432
    %vm434 = vcmask 589312
    %v435 = vsel %vm434, %v433, %v431
    %v436 = vadd.s32 %v402, 4294967224
    %v437 = vperm.slane %v382, %v436
    %vm438 = vcmask 654912
    %v439 = vsel %vm438, %v437, %v435
    %v440 = vadd.s32 %v402, 4294967216
    %v441 = vperm.slane %v385, %v440
    %vm442 = vcmask 720512
    %v443 = vsel %vm442, %v441, %v439
    %v444 = vadd.s32 %v402, 4294967208
    %v445 = vperm.slane %v388, %v444
    %vm446 = vcmask 786112
    %v447 = vsel %vm446, %v445, %v443
    %v448 = vadd.s32 %v402, 4294967200
    %v449 = vperm.slane %v391, %v448
    %vm450 = vcmask 851712
    %v451 = vsel %vm450, %v449, %v447
    %v452 = vadd.s32 %v402, 4294967192
    %v453 = vperm.slane %v394, %v452
    %vm454 = vcmask 917312
    %v455 = vsel %vm454, %v453, %v451
    %v456 = vadd.s32 %v402, 4294967184
    %v457 = vperm.slane %v397, %v456
    %vm458 = vcmask 982912
    %v459 = vsel %vm458, %v457, %v455
    %v460 = vadd.s32 %v402, 4294967176
    %v461 = vperm.slane %v400, %v460
    %vm462 = vcmask 1048512
    %v463 = vsel %vm462, %v461, %v459
    %vm464 = vcmask 1042434
    %v465 = vsel %vm464, %v463, %v463
    %vm466 = vcmask 1043459
    %v467 = vsel %vm466, %v463, %v465
    %vm468 = vcmask 1044484
    %v469 = vsel %vm468, %v463, %v467
    %vm470 = vcmask 1045509
    %v471 = vsel %vm470, %v463, %v469
    %vm472 = vcmask 1046534
    %v473 = vsel %vm472, %v463, %v471
    %vm474 = vcmask 1047559
    %v475 = vsel %vm474, %v463, %v473
    %v477 = vmul.f32 %v276, %v475
    %v478 = vmul.f32 %v281, %v475
    %v479 = vmul.f32 %v286, %v475
    %v480 = vmul.f32 %v291, %v475
    %v481 = vmul.f32 %v296, %v475
    %v482 = vmul.f32 %v301, %v475
    %v483 = vmul.f32 %v306, %v475
    %v484 = vmul.f32 %v311, %v475
    %v485 = vmul.f32 %v316, %v475
    %v486 = vmul.f32 %v321, %v475
    %v487 = vmul.f32 %v326, %v475
    %v488 = vmul.f32 %v331, %v475
    %v489 = vmul.f32 %v336, %v475
    %v490 = vmul.f32 %v341, %v475
    %v491 = vmul.f32 %v346, %v475
    %v492 = vmul.f32 %v351, %v475
    %vm493 = vcmp.gt.f32.partialorder %v477, 0.0
    %vm494 = vcmp.gt.f32.partialorder %v478, 0.0
    %vm495 = vcmp.gt.f32.partialorder %v479, 0.0
    %vm496 = vcmp.gt.f32.partialorder %v480, 0.0
    %vm497 = vcmp.gt.f32.partialorder %v481, 0.0
    %vm498 = vcmp.gt.f32.partialorder %v482, 0.0
    %vm499 = vcmp.gt.f32.partialorder %v483, 0.0
    %vm500 = vcmp.gt.f32.partialorder %v484, 0.0
    %vm501 = vcmp.gt.f32.partialorder %v485, 0.0
    %vm502 = vcmp.gt.f32.partialorder %v486, 0.0
    %vm503 = vcmp.gt.f32.partialorder %v487, 0.0
    %vm504 = vcmp.gt.f32.partialorder %v488, 0.0
    %vm505 = vcmp.gt.f32.partialorder %v489, 0.0
    %vm506 = vcmp.gt.f32.partialorder %v490, 0.0
    %vm507 = vcmp.gt.f32.partialorder %v491, 0.0
    %vm508 = vcmp.gt.f32.partialorder %v492, 0.0
    %v509 = vmul.f32 %v477, 0.2
    %v510 = vmul.f32 %v478, 0.2
    %v511 = vmul.f32 %v479, 0.2
    %v512 = vmul.f32 %v480, 0.2
    %v513 = vmul.f32 %v481, 0.2
    %v514 = vmul.f32 %v482, 0.2
    %v515 = vmul.f32 %v483, 0.2
    %v516 = vmul.f32 %v484, 0.2
    %v517 = vmul.f32 %v485, 0.2
    %v518 = vmul.f32 %v486, 0.2
    %v519 = vmul.f32 %v487, 0.2
    %v520 = vmul.f32 %v488, 0.2
    %v521 = vmul.f32 %v489, 0.2
    %v522 = vmul.f32 %v490, 0.2
    %v523 = vmul.f32 %v491, 0.2
    %v524 = vmul.f32 %v492, 0.2
    %v525 = vsel %vm493, %v477, %v509
    %v526 = vsel %vm494, %v478, %v510
    %v527 = vsel %vm495, %v479, %v511
    %v528 = vsel %vm496, %v480, %v512
    %v529 = vsel %vm497, %v481, %v513
    %v530 = vsel %vm498, %v482, %v514
    %v531 = vsel %vm499, %v483, %v515
    %v532 = vsel %vm500, %v484, %v516
    %v533 = vsel %vm501, %v485, %v517
    %v534 = vsel %vm502, %v486, %v518
    %v535 = vsel %vm503, %v487, %v519
    %v536 = vsel %vm504, %v488, %v520
    %v537 = vsel %vm505, %v489, %v521
    %v538 = vsel %vm506, %v490, %v522
    %v539 = vsel %vm507, %v491, %v523
    %v540 = vsel %vm508, %v492, %v524
    %v541 = vld [vmem:[#allocation6] sm:$0xff]
    %v542 = vld [vmem:[#allocation6 + $0x8] sm:$0xff]
    %v543 = vld [vmem:[#allocation6 + $0x10] sm:$0xff]
    %v544 = vld [vmem:[#allocation6 + $0x18] sm:$0xff]
    %v545 = vld [vmem:[#allocation6 + $0x20] sm:$0xff]
    %v546 = vld [vmem:[#allocation6 + $0x28] sm:$0xff]
    %v547 = vld [vmem:[#allocation6 + $0x30] sm:$0xff]
    %v548 = vld [vmem:[#allocation6 + $0x38] sm:$0xff]
    %v549 = vld [vmem:[#allocation6 + $0x40] sm:$0xff]
    %v550 = vld [vmem:[#allocation6 + $0x48] sm:$0xff]
    %v551 = vld [vmem:[#allocation6 + $0x50] sm:$0xff]
    %v552 = vld [vmem:[#allocation6 + $0x58] sm:$0xff]
    %v553 = vld [vmem:[#allocation6 + $0x60] sm:$0xff]
    %v554 = vld [vmem:[#allocation6 + $0x68] sm:$0xff]
    %v555 = vld [vmem:[#allocation6 + $0x70] sm:$0xff]
    %v556 = vld [vmem:[#allocation6 + $0x78] sm:$0xff]
    %v557 = vadd.f32 %v525, %v541
    %v558 = vadd.f32 %v526, %v542
    %v559 = vadd.f32 %v527, %v543
    %v560 = vadd.f32 %v528, %v544
    %v561 = vadd.f32 %v529, %v545
    %v562 = vadd.f32 %v530, %v546
    %v563 = vadd.f32 %v531, %v547
    %v564 = vadd.f32 %v532, %v548
    %v565 = vadd.f32 %v533, %v549
    %v566 = vadd.f32 %v534, %v550
    %v567 = vadd.f32 %v535, %v551
    %v568 = vadd.f32 %v536, %v552
    %v569 = vadd.f32 %v537, %v553
    %v570 = vadd.f32 %v538, %v554
    %v571 = vadd.f32 %v539, %v555
    %v572 = vadd.f32 %v540, %v556
    %573 = vmax.xlane.f32.xlu0 %v557
    %v574 = vpop.xlane.xlu0 %573
    %575 = vmax.xlane.f32.xlu0 %v558
    %v576 = vpop.xlane.xlu0 %575
    %577 = vmax.xlane.f32.xlu0 %v559
    %v578 = vpop.xlane.xlu0 %577
    %579 = vmax.xlane.f32.xlu0 %v560
    %v580 = vpop.xlane.xlu0 %579
    %581 = vmax.xlane.f32.xlu0 %v561
    %v582 = vpop.xlane.xlu0 %581
    %583 = vmax.xlane.f32.xlu0 %v562
    %v584 = vpop.xlane.xlu0 %583
    %585 = vmax.xlane.f32.xlu0 %v563
    %v586 = vpop.xlane.xlu0 %585
    %587 = vmax.xlane.f32.xlu0 %v564
    %v588 = vpop.xlane.xlu0 %587
    %589 = vmax.xlane.f32.xlu0 %v565
    %v590 = vpop.xlane.xlu0 %589
    %591 = vmax.xlane.f32.xlu0 %v566
    %v592 = vpop.xlane.xlu0 %591
    %593 = vmax.xlane.f32.xlu0 %v567
    %v594 = vpop.xlane.xlu0 %593
    %595 = vmax.xlane.f32.xlu0 %v568
    %v596 = vpop.xlane.xlu0 %595
    %597 = vmax.xlane.f32.xlu0 %v569
    %v598 = vpop.xlane.xlu0 %597
    %599 = vmax.xlane.f32.xlu0 %v570
    %v600 = vpop.xlane.xlu0 %599
    %601 = vmax.xlane.f32.xlu0 %v571
    %v602 = vpop.xlane.xlu0 %601
    %603 = vmax.xlane.f32.xlu0 %v572
    %v604 = vpop.xlane.xlu0 %603
    %v605 = vsub.f32 %v557, %v574
    %v606 = vsub.f32 %v558, %v576
    %v607 = vsub.f32 %v559, %v578
    %v608 = vsub.f32 %v560, %v580
    %v609 = vsub.f32 %v561, %v582
    %v610 = vsub.f32 %v562, %v584
    %v611 = vsub.f32 %v563, %v586
    %v612 = vsub.f32 %v564, %v588
    %v613 = vsub.f32 %v565, %v590
    %v614 = vsub.f32 %v566, %v592
    %v615 = vsub.f32 %v567, %v594
    %v616 = vsub.f32 %v568, %v596
    %v617 = vsub.f32 %v569, %v598
    %v618 = vsub.f32 %v570, %v600
    %v619 = vsub.f32 %v571, %v602
    %v620 = vsub.f32 %v572, %v604
    %v621 = vmul.f32 %v605, 1.442695
    %v622 = vpow.pop %v621
    %v623 = vmul.f32 %v606, 1.442695
    %v624 = vpow.pop %v623
    %v625 = vmul.f32 %v607, 1.442695
    %v626 = vpow.pop %v625
    %v627 = vmul.f32 %v608, 1.442695
    %v628 = vpow.pop %v627
    %v629 = vmul.f32 %v609, 1.442695
    %v630 = vpow.pop %v629
    %v631 = vmul.f32 %v610, 1.442695
    %v632 = vpow.pop %v631
    %v633 = vmul.f32 %v611, 1.442695
    %v634 = vpow.pop %v633
    %v635 = vmul.f32 %v612, 1.442695
    %v636 = vpow.pop %v635
    %v637 = vmul.f32 %v613, 1.442695
    %v638 = vpow.pop %v637
    %v639 = vmul.f32 %v614, 1.442695
    %v640 = vpow.pop %v639
    %v641 = vmul.f32 %v615, 1.442695
    %v642 = vpow.pop %v641
    %v643 = vmul.f32 %v616, 1.442695
    %v644 = vpow.pop %v643
    %v645 = vmul.f32 %v617, 1.442695
    %v646 = vpow.pop %v645
    %v647 = vmul.f32 %v618, 1.442695
    %v648 = vpow.pop %v647
    %v649 = vmul.f32 %v619, 1.442695
    %v650 = vpow.pop %v649
    %v651 = vmul.f32 %v620, 1.442695
    %v652 = vpow.pop %v651
    %653 = vadd.xlane.f32.xlu0 %v622
    %v654 = vpop.xlane.xlu0 %653
    %655 = vadd.xlane.f32.xlu0 %v624
    %v656 = vpop.xlane.xlu0 %655
    %657 = vadd.xlane.f32.xlu0 %v626
    %v658 = vpop.xlane.xlu0 %657
    %659 = vadd.xlane.f32.xlu0 %v628
    %v660 = vpop.xlane.xlu0 %659
    %661 = vadd.xlane.f32.xlu0 %v630
    %v662 = vpop.xlane.xlu0 %661
    %663 = vadd.xlane.f32.xlu0 %v632
    %v664 = vpop.xlane.xlu0 %663
    %665 = vadd.xlane.f32.xlu0 %v634
    %v666 = vpop.xlane.xlu0 %665
    %667 = vadd.xlane.f32.xlu0 %v636
    %v668 = vpop.xlane.xlu0 %667
    %669 = vadd.xlane.f32.xlu0 %v638
    %v670 = vpop.xlane.xlu0 %669
    %671 = vadd.xlane.f32.xlu0 %v640
    %v672 = vpop.xlane.xlu0 %671
    %673 = vadd.xlane.f32.xlu0 %v642
    %v674 = vpop.xlane.xlu0 %673
    %675 = vadd.xlane.f32.xlu0 %v644
    %v676 = vpop.xlane.xlu0 %675
    %677 = vadd.xlane.f32.xlu0 %v646
    %v678 = vpop.xlane.xlu0 %677
    %679 = vadd.xlane.f32.xlu0 %v648
    %v680 = vpop.xlane.xlu0 %679
    %681 = vadd.xlane.f32.xlu0 %v650
    %v682 = vpop.xlane.xlu0 %681
    %683 = vadd.xlane.f32.xlu0 %v652
    %v684 = vpop.xlane.xlu0 %683
    %v685 = vrcp.pop %v654
    %v686 = vrcp.pop %v656
    %v687 = vrcp.pop %v658
    %v688 = vrcp.pop %v660
    %v689 = vrcp.pop %v662
    %v690 = vrcp.pop %v664
    %v691 = vrcp.pop %v666
    %v692 = vrcp.pop %v668
    %v693 = vrcp.pop %v670
    %v694 = vrcp.pop %v672
    %v695 = vrcp.pop %v674
    %v696 = vrcp.pop %v676
    %v697 = vrcp.pop %v678
    %v698 = vrcp.pop %v680
    %v699 = vrcp.pop %v682
    %v700 = vrcp.pop %v684
    %v701 = vmul.f32 %v622, %v685
    %v702 = vmul.f32 %v624, %v686
    %v703 = vmul.f32 %v626, %v687
    %v704 = vmul.f32 %v628, %v688
    %v705 = vmul.f32 %v630, %v689
    %v706 = vmul.f32 %v632, %v690
    %v707 = vmul.f32 %v634, %v691
    %v708 = vmul.f32 %v636, %v692
    %v709 = vmul.f32 %v638, %v693
    %v710 = vmul.f32 %v640, %v694
    %v711 = vmul.f32 %v642, %v695
    %v712 = vmul.f32 %v644, %v696
    %v713 = vmul.f32 %v646, %v697
    %v714 = vmul.f32 %v648, %v698
    %v715 = vmul.f32 %v650, %v699
    %v716 = vmul.f32 %v652, %v700
    %v717 = vld [vmem:[%s6] sm:$0xff]
    %v718 = vld [vmem:[%s6 + $0x8] sm:$0xff]
    %v719 = vld [vmem:[%s6 + $0x10] sm:$0xff]
    %v720 = vld [vmem:[%s6 + $0x18] sm:$0xff]
    %v721 = vld [vmem:[%s6 + $0x20] sm:$0xff]
    %v722 = vld [vmem:[%s6 + $0x28] sm:$0xff]
    %v723 = vld [vmem:[%s6 + $0x30] sm:$0xff]
    %v724 = vld [vmem:[%s6 + $0x38] sm:$0xff]
    %v725 = vld [vmem:[%s6 + $0x40] sm:$0xff]
    %v726 = vld [vmem:[%s6 + $0x48] sm:$0xff]
    %v727 = vld [vmem:[%s6 + $0x50] sm:$0xff]
    %v728 = vld [vmem:[%s6 + $0x58] sm:$0xff]
    %v729 = vld [vmem:[%s6 + $0x60] sm:$0xff]
    %v730 = vld [vmem:[%s6 + $0x68] sm:$0xff]
    %v731 = vld [vmem:[%s6 + $0x70] sm:$0xff]
    %v732 = vld [vmem:[%s6 + $0x78] sm:$0xff]
    %733 = vmatpush.msra.mxu0 %v732
    %734 = vmatpush.msra.mxu0 %v731
    %735 = vmatpush.msra.mxu0 %v730
    %736 = vmatpush.msra.mxu0 %v729
    %737 = vmatpush.msra.mxu0 %v728
    %738 = vmatpush.msra.mxu0 %v727
    %739 = vmatpush.msra.mxu0 %v726
    %740 = vmatpush.msra.mxu0 %v725
    %741 = vmatpush.msra.mxu0 %v724
    %742 = vmatpush.msra.mxu0 %v723
    %743 = vmatpush.msra.mxu0 %v722
    %744 = vmatpush.msra.mxu0 %v721
    %745 = vmatpush.msra.mxu0 %v720
    %746 = vmatpush.msra.mxu0 %v719
    %747 = vmatpush.msra.mxu0 %v718
    %748 = vmatpush.msra.mxu0 %v717
    %749 = vmatmul.f32.gmra.mxu0 %v701
    %v750 = vpop.f32.mrf.mxu0
    %v751 = vadd.f32 0.0, %v750
    %752 = vmatmul.f32.gmra.mxu0 %v702
    %v753 = vpop.f32.mrf.mxu0
    %v754 = vadd.f32 0.0, %v753
    %755 = vmatmul.f32.gmra.mxu0 %v703
    %v756 = vpop.f32.mrf.mxu0
    %v757 = vadd.f32 0.0, %v756
    %758 = vmatmul.f32.gmra.mxu0 %v704
    %v759 = vpop.f32.mrf.mxu0
    %v760 = vadd.f32 0.0, %v759
    %761 = vmatmul.f32.gmra.mxu0 %v705
    %v762 = vpop.f32.mrf.mxu0
    %v763 = vadd.f32 0.0, %v762
    %764 = vmatmul.f32.gmra.mxu0 %v706
    %v765 = vpop.f32.mrf.mxu0
    %v766 = vadd.f32 0.0, %v765
    %767 = vmatmul.f32.gmra.mxu0 %v707
    %v768 = vpop.f32.mrf.mxu0
    %v769 = vadd.f32 0.0, %v768
    %770 = vmatmul.f32.gmra.mxu0 %v708
    %v771 = vpop.f32.mrf.mxu0
    %v772 = vadd.f32 0.0, %v771
    %773 = vmatmul.f32.gmra.mxu0 %v709
    %v774 = vpop.f32.mrf.mxu0
    %v775 = vadd.f32 0.0, %v774
    %776 = vmatmul.f32.gmra.mxu0 %v710
    %v777 = vpop.f32.mrf.mxu0
    %v778 = vadd.f32 0.0, %v777
    %779 = vmatmul.f32.gmra.mxu0 %v711
    %v780 = vpop.f32.mrf.mxu0
    %v781 = vadd.f32 0.0, %v780
    %782 = vmatmul.f32.gmra.mxu0 %v712
    %v783 = vpop.f32.mrf.mxu0
    %v784 = vadd.f32 0.0, %v783
    %785 = vmatmul.f32.gmra.mxu0 %v713
    %v786 = vpop.f32.mrf.mxu0
    %v787 = vadd.f32 0.0, %v786
    %788 = vmatmul.f32.gmra.mxu0 %v714
    %v789 = vpop.f32.mrf.mxu0
    %v790 = vadd.f32 0.0, %v789
    %791 = vmatmul.f32.gmra.mxu0 %v715
    %v792 = vpop.f32.mrf.mxu0
    %v793 = vadd.f32 0.0, %v792
    %794 = vmatmul.f32.gmra.mxu0 %v716
    %v795 = vpop.f32.mrf.mxu0
    %v796 = vadd.f32 0.0, %v795
    %797 = vdwg.mxu0
    %v798 = vld [vmem:[%s5] sm:$0xff]
    %v799 = vld [vmem:[%s5 + $0x8] sm:$0xff]
    %v800 = vld [vmem:[%s5 + $0x10] sm:$0xff]
    %v801 = vld [vmem:[%s5 + $0x18] sm:$0xff]
    %v802 = vld [vmem:[%s5 + $0x20] sm:$0xff]
    %v803 = vld [vmem:[%s5 + $0x28] sm:$0xff]
    %v804 = vld [vmem:[%s5 + $0x30] sm:$0xff]
    %v805 = vld [vmem:[%s5 + $0x38] sm:$0xff]
    %806 = vmatpush.msra.mxu0 %v796
    %807 = vmatpush.msra.mxu0 %v793
    %808 = vmatpush.msra.mxu0 %v790
    %809 = vmatpush.msra.mxu0 %v787
    %810 = vmatpush.msra.mxu0 %v784
    %811 = vmatpush.msra.mxu0 %v781
    %812 = vmatpush.msra.mxu0 %v778
    %813 = vmatpush.msra.mxu0 %v775
    %814 = vmatpush.msra.mxu0 %v772
    %815 = vmatpush.msra.mxu0 %v769
    %816 = vmatpush.msra.mxu0 %v766
    %817 = vmatpush.msra.mxu0 %v763
    %818 = vmatpush.msra.mxu0 %v760
    %819 = vmatpush.msra.mxu0 %v757
    %820 = vmatpush.msra.mxu0 %v754
    %821 = vmatpush.msra.mxu0 %v751
    %822 = vmatmul.f32.gmra.mxu0 %v798
    %v823 = vpop.f32.mrf.mxu0
    %v824 = vadd.f32 0.0, %v823
    %825 = vmatmul.f32.gmra.mxu0 %v799
    %v826 = vpop.f32.mrf.mxu0
    %v827 = vadd.f32 0.0, %v826
    %828 = vmatmul.f32.gmra.mxu0 %v800
    %v829 = vpop.f32.mrf.mxu0
    %v830 = vadd.f32 0.0, %v829
    %831 = vmatmul.f32.gmra.mxu0 %v801
    %v832 = vpop.f32.mrf.mxu0
    %v833 = vadd.f32 0.0, %v832
    %834 = vmatmul.f32.gmra.mxu0 %v802
    %v835 = vpop.f32.mrf.mxu0
    %v836 = vadd.f32 0.0, %v835
    %837 = vmatmul.f32.gmra.mxu0 %v803
    %v838 = vpop.f32.mrf.mxu0
    %v839 = vadd.f32 0.0, %v838
    %840 = vmatmul.f32.gmra.mxu0 %v804
    %v841 = vpop.f32.mrf.mxu0
    %v842 = vadd.f32 0.0, %v841
    %843 = vmatmul.f32.gmra.mxu0 %v805
    %v844 = vpop.f32.mrf.mxu0
    %v845 = vadd.f32 0.0, %v844
    %846 = vdwg.mxu0
    %v847 = vmul.f32 %v824, 0.5
    %v848 = vmul.f32 %v827, 0.5
    %v849 = vmul.f32 %v830, 0.5
    %v850 = vmul.f32 %v833, 0.5
    %v851 = vmul.f32 %v836, 0.5
    %v852 = vmul.f32 %v839, 0.5
    %v853 = vmul.f32 %v842, 0.5
    %v854 = vmul.f32 %v845, 0.5
    %855 = vxpose.xlu0.b32.start [1/16] %v847, 128
    %856 = vxpose.xlu0.b32.cont [2/16] %v848, 128
    %857 = vxpose.xlu0.b32.cont [3/16] %v849, 128
    %858 = vxpose.xlu0.b32.cont [4/16] %v850, 128
    %859 = vxpose.xlu0.b32.cont [5/16] %v851, 128
    %860 = vxpose.xlu0.b32.cont [6/16] %v852, 128
    %861 = vxpose.xlu0.b32.cont [7/16] %v853, 128
    %862 = vxpose.xlu0.b32.cont [8/16] %v854, 128
    %863 = vxpose.xlu0.b32.cont [9/16] 0.0, 128
    %864 = vxpose.xlu0.b32.cont [10/16] 0.0, 128
    %865 = vxpose.xlu0.b32.cont [11/16] 0.0, 128
    %866 = vxpose.xlu0.b32.cont [12/16] 0.0, 128
    %867 = vxpose.xlu0.b32.cont [13/16] 0.0, 128
    %868 = vxpose.xlu0.b32.cont [14/16] 0.0, 128
    %869 = vxpose.xlu0.b32.cont [15/16] 0.0, 128
    %870 = vxpose.xlu0.b32.end [16/16] 0.0, 128
    %v871 = vpop.trf.xlu0
    %v872 = vpop.trf.xlu0
    %v873 = vpop.trf.xlu0
    %v874 = vpop.trf.xlu0
    %v875 = vpop.trf.xlu0
    %v876 = vpop.trf.xlu0
    %v877 = vpop.trf.xlu0
    %v878 = vpop.trf.xlu0
    %v879 = vpop.trf.xlu0
    %v880 = vpop.trf.xlu0
    %v881 = vpop.trf.xlu0
    %v882 = vpop.trf.xlu0
    %v883 = vpop.trf.xlu0
    %v884 = vpop.trf.xlu0
    %v885 = vpop.trf.xlu0
    %v886 = vpop.trf.xlu0
    %v887 = vadd.f32 %v847, %v871
    %v888 = vadd.f32 %v848, %v872
    %v889 = vadd.f32 %v849, %v873
    %v890 = vadd.f32 %v850, %v874
    %v891 = vadd.f32 %v851, %v875
    %v892 = vadd.f32 %v852, %v876
    %v893 = vadd.f32 %v853, %v877
    %v894 = vadd.f32 %v854, %v878
    %v895 = vmul.f32 %v887, 0.5
    %v896 = vmul.f32 %v888, 0.5
    %v897 = vmul.f32 %v889, 0.5
    %v898 = vmul.f32 %v890, 0.5
    %v899 = vmul.f32 %v891, 0.5
    %v900 = vmul.f32 %v892, 0.5
    %v901 = vmul.f32 %v893, 0.5
    %v902 = vmul.f32 %v894, 0.5
    %vm903 = vcmask 523264
    %v904 = vsel %vm903, %v895, 0.0
    %v905 = vsel %vm903, %v896, 0.0
    %v906 = vadd.f32 %v904, %v905
    %v907 = vsel %vm903, %v897, 0.0
    %v908 = vadd.f32 %v906, %v907
    %v909 = vsel %vm903, %v898, 0.0
    %v910 = vadd.f32 %v908, %v909
    %v911 = vsel %vm903, %v899, 0.0
    %v912 = vadd.f32 %v910, %v911
    %v913 = vsel %vm903, %v900, 0.0
    %v914 = vadd.f32 %v912, %v913
    %v915 = vsel %vm903, %v901, 0.0
    %v916 = vadd.f32 %v914, %v915
    %v917 = vsel %vm903, %v902, 0.0
    %v918 = vadd.f32 %v916, %v917
    %v919 = vrot.slane %v918, 4
    %v920 = vadd.f32 %v918, %v919
    %v921 = vrot.slane %v920, 2
    %v922 = vadd.f32 %v920, %v921
    %v923 = vrot.slane %v922, 1
    %v924 = vadd.f32 %v922, %v923
    %v925 = vsub.f32 %v924, %v895
    %v926 = vsub.f32 %v924, %v896
    %v927 = vsub.f32 %v924, %v897
    %v928 = vsub.f32 %v924, %v898
    %v929 = vsub.f32 %v924, %v899
    %v930 = vsub.f32 %v924, %v900
    %v931 = vsub.f32 %v924, %v901
    %v932 = vsub.f32 %v924, %v902
    %941 = vrot.lane.b32.xlu0 %v925, 64
    %v942 = vpop.permute.xlu0 %941
    %943 = vrot.lane.b32.xlu0 %v926, 64
    %v944 = vpop.permute.xlu0 %943
    %945 = vrot.lane.b32.xlu0 %v927, 64
    %v946 = vpop.permute.xlu0 %945
    %947 = vrot.lane.b32.xlu0 %v928, 64
    %v948 = vpop.permute.xlu0 %947
    %949 = vrot.lane.b32.xlu0 %v929, 64
    %v950 = vpop.permute.xlu0 %949
    %951 = vrot.lane.b32.xlu0 %v930, 64
    %v952 = vpop.permute.xlu0 %951
    %953 = vrot.lane.b32.xlu0 %v931, 64
    %v954 = vpop.permute.xlu0 %953
    %955 = vrot.lane.b32.xlu0 %v932, 64
    %v956 = vpop.permute.xlu0 %955
    %v965 = vsel %vm903, %v895, %v942
    %v966 = vsel %vm903, %v896, %v944
    %v967 = vsel %vm903, %v897, %v946
    %v968 = vsel %vm903, %v898, %v948
    %v969 = vsel %vm903, %v899, %v950
    %v970 = vsel %vm903, %v900, %v952
    %v971 = vsel %vm903, %v901, %v954
    %v972 = vsel %vm903, %v902, %v956
    %973 = vst [vmem:[%s8] sm:$0xff] %v965
    %974 = vst [vmem:[%s8 + $0x8] sm:$0xff] %v966
    %975 = vst [vmem:[%s8 + $0x10] sm:$0xff] %v967
    %976 = vst [vmem:[%s8 + $0x18] sm:$0xff] %v968
    %977 = vst [vmem:[%s8 + $0x20] sm:$0xff] %v969
    %978 = vst [vmem:[%s8 + $0x28] sm:$0xff] %v970
    %979 = vst [vmem:[%s8 + $0x30] sm:$0xff] %v971
    %980 = vst [vmem:[%s8 + $0x38] sm:$0xff] %v972
    // Predicated region
    $region42: #{chebnet_forward.2} parent=1 // pred_check
      _
    $region43: #{chebnet_forward.2} parent=1 // pred_check_branch
      %982 = sbr.rel (0) target = $region45
    $region44: #{chebnet_forward.2} parent=1 // pred_region
      _
    $region45: #{chebnet_forward.2} parent=1 // pred_fallthru
      _
    // Predicated region
    $region46: #{chebnet_forward.2} parent=1 // pred_check
      _
    $region47: #{chebnet_forward.2} parent=1 // pred_check_branch
      %984 = sbr.rel (0) target = $region49
    $region48: #{chebnet_forward.2} parent=1 // pred_region
      _
    $region49: #{chebnet_forward.2} parent=1 // pred_fallthru
      _
    // Predicated region
    $region50: #{chebnet_forward.2} parent=1 // pred_check
      _
    $region51: #{chebnet_forward.2} parent=1 // pred_check_branch
      %986 = sbr.rel (0) target = $region53
    $region52: #{chebnet_forward.2} parent=1 // pred_region
      _
    $region53: #{chebnet_forward.2} parent=1 // pred_fallthru
      _
    // Predicated region
    $region54: #{chebnet_forward.2} parent=1 // pred_check
      _
    $region55: #{chebnet_forward.2} parent=1 // pred_check_branch
      %988 = sbr.rel (0) target = $region57
    $region56: #{chebnet_forward.2} parent=1 // pred_region
      _
    $region57: #{chebnet_forward.2} parent=1 // pred_fallthru
      _
    %989 = vsyncpa [#allocation3], 1
    %990 = vsyncpa [#allocation5], 1

</llo_original>
